<compile_context>
chip_gen: v6e
topology: v6e:2x2x1
jax: 0.10.0
libtpu: 0.0.40
codegen_flags: <defaults>
</compile_context>

<pallas_src>
import jax
import jax.numpy as jnp
import numpy as np
from jax import lax
from jax.experimental import pallas as pl
from jax.experimental.pallas import tpu as pltpu


# ----------------------------------------------------------------------------
# Pallas kernel
# ----------------------------------------------------------------------------
def _glf_kernel(x_ref, pre_g_ref, pre_b_ref, dw_ref, wrt_ref, wit_ref,
                gw2_ref, fh_ref, ih_ref, cmat_ref,
                post_g_ref, post_b_ref, o_ref):
    eps = 1e-6
    x = x_ref[0]                          # (dim, H, W) f32
    dim, H, W = x.shape
    C2 = dim // 2
    Wf = gw2_ref.shape[1] // 2
    CW = C2 * Wf

    # ---- pre-norm: LayerNorm over the channel axis (channels_first) ----
    u = jnp.mean(x, axis=0, keepdims=True)
    s = jnp.mean((x - u) ** 2, axis=0, keepdims=True)
    xn = (x - u) * lax.rsqrt(s + eps)
    xn = pre_g_ref[...] * xn + pre_b_ref[...]          # (dim,1,1) broadcast

    x1 = xn[:C2]                          # local (depthwise conv) branch
    x2 = xn[C2:]                          # global (spectral) branch

    # ---- spectral branch: rfft2 -> complex weight -> irfft2 (ortho),
    #      all channels batched into 4 MXU matmuls ----
    def mm(a, b):
        # default precision: single-pass MXU (bf16-native on v6e/v7x)
        return jnp.dot(a, b, preferred_element_type=jnp.float32)

    # stack channels along the matmul M dimension: (C2*H, W)
    x2f = jnp.concatenate([x2[c] for c in range(C2)], axis=0)

    # forward column rfft, real & imag in ONE matmul:
    # (C2*H, W) @ (W, 2*Wf) -> [Re | Im] along the lane dim
    t = mm(x2f, gw2_ref[...])             # (C2*H, 2*Wf)

    # corner turn + Re/Im split in a single concat -> (H, 2*C2*Wf),
    # first CW lanes = Re (channels packed), last CW lanes = Im.
    tt = jnp.concatenate(
        [t[c * H:(c + 1) * H, :Wf] for c in range(C2)]
        + [t[c * H:(c + 1) * H, Wf:] for c in range(C2)], axis=1)

    # forward row DFT (contract H); fh = [Fr; Fi] stacked -> ONE matmul
    af = mm(fh_ref[...], tt)               # (2H, 2*C2*Wf)
    zr = af[:H, :CW] - af[H:, CW:]         # Re(rfft2), (H, C2*Wf)
    zi = af[:H, CW:] + af[H:, :CW]         # Im(rfft2)

    # per-channel complex weight, pre-transposed host-side to (H, C2*Wf)
    wr = wrt_ref[...]
    wi = wit_ref[...]
    pr = zr * wr - zi * wi
    pi = zr * wi + zi * wr

    # inverse row DFT (contract H); ih = [IFr; IFi] stacked -> ONE matmul
    bf = mm(ih_ref[...], jnp.concatenate([pr, pi], axis=1))   # (2H, 2*C2*Wf)
    rr = bf[:H, :CW] - bf[H:, CW:]         # Re after inverse-H transform
    ri = bf[:H, CW:] + bf[H:, :CW]         # Im

    def turn_bwd(a):                       # (H, C2*Wf) -> (C2*H, Wf)
        return jnp.concatenate(
            [a[:, c * Wf:(c + 1) * Wf] for c in range(C2)], axis=0)

    qr = turn_bwd(rr)
    qi = turn_bwd(ri)

    # inverse Hermitian column transform: [Re | Im] @ [[Cr]; [Ci]] -> real out
    spec2d = mm(jnp.concatenate([qr, qi], axis=1), cmat_ref[...])  # (C2*H, W)
    spec = jnp.stack([spec2d[c * H:(c + 1) * H, :] for c in range(C2)],
                     axis=0)                                        # (C2,H,W)

    # ---- depthwise 3x3 conv, padding=1, groups=C2, no bias ----
    zrow = jnp.zeros((C2, 1, W), jnp.float32)
    zcol = jnp.zeros((C2, H + 2, 1), jnp.float32)
    xp = jnp.concatenate([zrow, x1, zrow], axis=1)      # (C2, H+2, W)
    xp = jnp.concatenate([zcol, xp, zcol], axis=2)      # (C2, H+2, W+2)
    conv = jnp.zeros((C2, H, W), jnp.float32)
    for ki in range(3):
        for kj in range(3):
            conv = conv + dw_ref[ki * 3 + kj] * xp[:, ki:ki + H, kj:kj + W]

    # ---- channel interleave: out[2c] = conv branch, out[2c+1] = spectral ----
    y = jnp.stack([conv, spec], axis=1).reshape(dim, H, W)

    # ---- post-norm ----
    u2 = jnp.mean(y, axis=0, keepdims=True)
    s2 = jnp.mean((y - u2) ** 2, axis=0, keepdims=True)
    yn = (y - u2) * lax.rsqrt(s2 + eps)
    o_ref[0] = post_g_ref[...] * yn + post_b_ref[...]


# ----------------------------------------------------------------------------
# Glue (plain JAX / numpy): DFT matrices, weight interpolation, pallas_call
# ----------------------------------------------------------------------------
def _bilinear_resize_align_corners(w, out_h, out_w):
    # w: (C2, h_in, w_in, 2) -> (C2, out_h, out_w, 2)
    # Matches F.interpolate(..., mode='bilinear', align_corners=True).
    _, in_h, in_w, _ = w.shape
    if in_h == out_h and in_w == out_w:
        return w

    def coords(n_in, n_out):
        if n_out == 1:
            return jnp.zeros((1,), jnp.float32)
        return jnp.arange(n_out, dtype=jnp.float32) * ((n_in - 1) / (n_out - 1))

    ys = coords(in_h, out_h)
    xs = coords(in_w, out_w)
    y0 = jnp.floor(ys).astype(jnp.int32); y1 = jnp.minimum(y0 + 1, in_h - 1)
    x0 = jnp.floor(xs).astype(jnp.int32); x1 = jnp.minimum(x0 + 1, in_w - 1)
    wy = (ys - y0.astype(jnp.float32))[None, :, None, None]
    wx = (xs - x0.astype(jnp.float32))[None, None, :, None]

    def g(yi, xi):
        return w[:, yi][:, :, xi]                       # (C2, out_h, out_w, 2)

    top = g(y0, x0) * (1.0 - wx) + g(y0, x1) * wx
    bot = g(y1, x0) * (1.0 - wx) + g(y1, x1) * wx
    return top * (1.0 - wy) + bot * wy


def global_local_filter(x, params):
    f32 = jnp.float32
    B, dim, H, W = x.shape
    assert dim % 2 == 0, "GlobalLocalFilter requires an even channel count"
    C2 = dim // 2
    Wf = W // 2 + 1

    # --- DFT / inverse-DFT matrices (ortho norm), float64 on host -> f32 ---
    hh = np.arange(H, dtype=np.float64)
    ww = np.arange(W, dtype=np.float64)
    vv = np.arange(Wf, dtype=np.float64)

    ang_h = 2.0 * np.pi * np.outer(hh, hh) / H                     # [u, h]
    fhr = np.cos(ang_h) / np.sqrt(H)
    fhi = -np.sin(ang_h) / np.sqrt(H)
    fh = np.concatenate([fhr, fhi], axis=0).astype(np.float32)     # (2H, H)
    ih = np.concatenate([fhr, -fhi], axis=0).astype(np.float32)    # inverse

    ang_w = 2.0 * np.pi * np.outer(ww, vv) / W                     # [w, v]
    gwr = np.cos(ang_w) / np.sqrt(W)                               # (W, Wf)
    gwi = -np.sin(ang_w) / np.sqrt(W)
    gw2 = np.concatenate([gwr, gwi], axis=1).astype(np.float32)    # (W, 2Wf)

    cvec = np.full((Wf,), 2.0, np.float64)
    cvec[0] = 1.0
    if W % 2 == 0:
        cvec[Wf - 1] = 1.0
    ang_c = 2.0 * np.pi * np.outer(vv, ww) / W                     # [v, w]
    cr = cvec[:, None] * np.cos(ang_c) / np.sqrt(W)
    ci = -cvec[:, None] * np.sin(ang_c) / np.sqrt(W)
    cmat = np.concatenate([cr, ci], axis=0).astype(np.float32)     # (2Wf, W)

    # --- complex weight at the rfft2 resolution, pre-turned to (H, C2*Wf) ---
    cw = params["complex_weight"].astype(f32)                      # (C2,h,w,2)
    if cw.shape[1] != H or cw.shape[2] != Wf:
        cw = _bilinear_resize_align_corners(cw, H, Wf)
    wrt = jnp.transpose(cw[..., 0], (1, 0, 2)).reshape(H, C2 * Wf)
    wit = jnp.transpose(cw[..., 1], (1, 0, 2)).reshape(H, C2 * Wf)

    # depthwise weight (C2, 1, 3, 3) -> (9, C2, 1, 1), tap-major
    dw = params["dw_weight"].astype(f32).reshape(C2, 9).T.reshape(9, C2, 1, 1)

    pre_g = params["pre_gamma"].astype(f32).reshape(dim, 1, 1)
    pre_b = params["pre_beta"].astype(f32).reshape(dim, 1, 1)
    post_g = params["post_gamma"].astype(f32).reshape(dim, 1, 1)
    post_b = params["post_beta"].astype(f32).reshape(dim, 1, 1)

    def _full_spec(shape):
        zeros = (0,) * len(shape)
        return pl.BlockSpec(shape, lambda b, zeros=zeros: zeros)

    grid_spec = pltpu.PrefetchScalarGridSpec(
        num_scalar_prefetch=0,
        grid=(B,),
        in_specs=[
            pl.BlockSpec((1, dim, H, W), lambda b: (b, 0, 0, 0)),   # x
            _full_spec((dim, 1, 1)), _full_spec((dim, 1, 1)),       # pre LN
            _full_spec((9, C2, 1, 1)),                              # dw taps
            _full_spec((H, C2 * Wf)), _full_spec((H, C2 * Wf)),     # wrt, wit
            _full_spec((W, 2 * Wf)),                                # gw2
            _full_spec((2 * H, H)), _full_spec((2 * H, H)),         # fh, ih
            _full_spec((2 * Wf, W)),                                # cmat
            _full_spec((dim, 1, 1)), _full_spec((dim, 1, 1)),       # post LN
        ],
        out_specs=pl.BlockSpec((1, dim, H, W), lambda b: (b, 0, 0, 0)),
        scratch_shapes=[],
    )

    return pl.pallas_call(
        _glf_kernel,
        out_shape=jax.ShapeDtypeStruct((B, dim, H, W), jnp.float32),
        grid_spec=grid_spec,
        compiler_params=pltpu.CompilerParams(
            dimension_semantics=("parallel",)),   # megacore-shardable batch
    )(x.astype(f32), pre_g, pre_b, dw, wrt, wit,
      jnp.asarray(gw2), jnp.asarray(fh), jnp.asarray(ih),
      jnp.asarray(cmat), post_g, post_b)


# ----------------------------------------------------------------------------
# Pure-JAX reference (mirrors the PyTorch forward) for verification
# ----------------------------------------------------------------------------
def reference(x, params):
    eps = 1e-6

    def ln(z, g, b):
        u = z.mean(axis=1, keepdims=True)
        s = ((z - u) ** 2).mean(axis=1, keepdims=True)
        zn = (z - u) / jnp.sqrt(s + eps)
        return g[None, :, None, None] * zn + b[None, :, None, None]

    B, dim, H, W = x.shape
    C2 = dim // 2
    Wf = W // 2 + 1

    x = ln(x.astype(jnp.float32), params["pre_gamma"], params["pre_beta"])
    x1, x2 = x[:, :C2], x[:, C2:]

    x1 = lax.conv_general_dilated(
        x1, params["dw_weight"], (1, 1), "SAME",
        dimension_numbers=("NCHW", "OIHW", "NCHW"),
        feature_group_count=C2, precision=lax.Precision.HIGHEST)

    cw = params["complex_weight"].astype(jnp.float32)
    if cw.shape[1] != H or cw.shape[2] != Wf:
        cw = _bilinear_resize_align_corners(cw, H, Wf)
    wc = cw[..., 0] + 1j * cw[..., 1]

    X2 = jnp.fft.rfft2(x2.astype(jnp.float32), axes=(2, 3), norm="ortho")
    X2 = X2 * wc[None]
    x2 = jnp.fft.irfft2(X2, s=(H, W), axes=(2, 3), norm="ortho")

    y = jnp.stack([x1, x2], axis=2).reshape(B, dim, H, W)
    return ln(y, params["post_gamma"], params["post_beta"])


# ----------------------------------------------------------------------------
if __name__ == "__main__":
    key = jax.random.PRNGKey(0)
    # dim=4 -> C2=2; spatial 16x16 (rfft2 grid (16, 9)), so the (14, 8)
    # complex weight is bilinearly resized like in the PyTorch forward.
    B, dim, H, W = 2, 4, 16, 16
    h_param, w_param = 14, 8
    C2 = dim // 2

    ks = jax.random.split(key, 7)
    params = {
        "pre_gamma": 1.0 + 0.1 * jax.random.normal(ks[0], (dim,), jnp.float32),
        "pre_beta": 0.1 * jax.random.normal(ks[1], (dim,), jnp.float32),
        "post_gamma": 1.0 + 0.1 * jax.random.normal(ks[2], (dim,), jnp.float32),
        "post_beta": 0.1 * jax.random.normal(ks[3], (dim,), jnp.float32),
        "dw_weight": 0.1 * jax.random.normal(ks[4], (C2, 1, 3, 3), jnp.float32),
        "complex_weight": 0.02 * jax.random.normal(
            ks[5], (C2, h_param, w_param, 2), jnp.float32),
    }
    x = jax.random.normal(ks[6], (B, dim, H, W), jnp.float32)

    out = global_local_filter(x, params)
    out = jax.block_until_ready(out)

    ref = reference(x, params)
    # MXU matmuls run at default (single-pass) precision; the ortho DFT chain
    # keeps the error comfortably inside 2e-2.
    np.testing.assert_allclose(np.asarray(out), np.asarray(ref),
                               atol=2e-2, rtol=2e-2)
    print("KERNEL_OK")
</pallas_src>

<mosaic_0001>
module attributes {stable_mosaic.version = 11 : i64} {
  func.func @_glf_kernel(%arg0: i32, %arg1: memref<1x4x16x16xf32, #tpu.memory_space<vmem>>, %arg2: memref<4x1x1xf32, #tpu.memory_space<vmem>>, %arg3: memref<4x1x1xf32, #tpu.memory_space<vmem>>, %arg4: memref<9x2x1x1xf32, #tpu.memory_space<vmem>>, %arg5: memref<16x18xf32, #tpu.memory_space<vmem>>, %arg6: memref<16x18xf32, #tpu.memory_space<vmem>>, %arg7: memref<16x18xf32, #tpu.memory_space<vmem>>, %arg8: memref<32x16xf32, #tpu.memory_space<vmem>>, %arg9: memref<32x16xf32, #tpu.memory_space<vmem>>, %arg10: memref<18x16xf32, #tpu.memory_space<vmem>>, %arg11: memref<4x1x1xf32, #tpu.memory_space<vmem>>, %arg12: memref<4x1x1xf32, #tpu.memory_space<vmem>>, %arg13: memref<1x4x16x16xf32, #tpu.memory_space<vmem>>) attributes {dimension_semantics = [#tpu.dimension_semantics<parallel>], iteration_bounds = array<i64: 2>, scalar_prefetch = 0 : i64, scratch_operands = 0 : i64, tpu.core_type = #tpu.core_type<tc>, window_params = [{transform_indices = @transform_0, window_bounds = array<i64: 1, 4, 16, 16>}, {pipeline_mode = #tpu.pipeline_mode<synchronous>, transform_indices = @transform_1, window_bounds = array<i64: 4, 1, 1>}, {pipeline_mode = #tpu.pipeline_mode<synchronous>, transform_indices = @transform_2, window_bounds = array<i64: 4, 1, 1>}, {pipeline_mode = #tpu.pipeline_mode<synchronous>, transform_indices = @transform_3, window_bounds = array<i64: 9, 2, 1, 1>}, {pipeline_mode = #tpu.pipeline_mode<synchronous>, transform_indices = @transform_4, window_bounds = array<i64: 16, 18>}, {pipeline_mode = #tpu.pipeline_mode<synchronous>, transform_indices = @transform_5, window_bounds = array<i64: 16, 18>}, {pipeline_mode = #tpu.pipeline_mode<synchronous>, transform_indices = @transform_6, window_bounds = array<i64: 16, 18>}, {pipeline_mode = #tpu.pipeline_mode<synchronous>, transform_indices = @transform_7, window_bounds = array<i64: 32, 16>}, {pipeline_mode = #tpu.pipeline_mode<synchronous>, transform_indices = @transform_8, window_bounds = array<i64: 32, 16>}, {pipeline_mode = #tpu.pipeline_mode<synchronous>, transform_indices = @transform_9, window_bounds = array<i64: 18, 16>}, {pipeline_mode = #tpu.pipeline_mode<synchronous>, transform_indices = @transform_10, window_bounds = array<i64: 4, 1, 1>}, {pipeline_mode = #tpu.pipeline_mode<synchronous>, transform_indices = @transform_11, window_bounds = array<i64: 4, 1, 1>}, {transform_indices = @transform_12, window_bounds = array<i64: 1, 4, 16, 16>}]} {
    %c0 = arith.constant 0 : index
    %c0_0 = arith.constant 0 : index
    %c0_1 = arith.constant 0 : index
    %c0_2 = arith.constant 0 : index
    %0 = vector.load %arg1[%c0, %c0_0, %c0_1, %c0_2] : memref<1x4x16x16xf32, #tpu.memory_space<vmem>>, vector<1x4x16x16xf32>
    %1 = vector.shape_cast %0 : vector<1x4x16x16xf32> to vector<4x16x16xf32>
    %cst = arith.constant dense<0.000000e+00> : vector<16x16xf32>
    %2 = vector.multi_reduction <add>, %1, %cst [0] : vector<4x16x16xf32> to vector<16x16xf32>
    %3 = vector.shape_cast %2 : vector<16x16xf32> to vector<1x16x16xf32>
    %cst_3 = arith.constant 4.000000e+00 : f32
    %4 = vector.broadcast %cst_3 : f32 to vector<1x16x16xf32>
    %5 = arith.divf %3, %4 : vector<1x16x16xf32>
    %6 = vector.broadcast %5 : vector<1x16x16xf32> to vector<4x16x16xf32>
    %7 = arith.subf %1, %6 : vector<4x16x16xf32>
    %8 = arith.mulf %7, %7 : vector<4x16x16xf32>
    %cst_4 = arith.constant dense<0.000000e+00> : vector<16x16xf32>
    %9 = vector.multi_reduction <add>, %8, %cst_4 [0] : vector<4x16x16xf32> to vector<16x16xf32>
    %10 = vector.shape_cast %9 : vector<16x16xf32> to vector<1x16x16xf32>
    %cst_5 = arith.constant 4.000000e+00 : f32
    %11 = vector.broadcast %cst_5 : f32 to vector<1x16x16xf32>
    %12 = arith.divf %10, %11 : vector<1x16x16xf32>
    %13 = vector.broadcast %5 : vector<1x16x16xf32> to vector<4x16x16xf32>
    %14 = arith.subf %1, %13 : vector<4x16x16xf32>
    %cst_6 = arith.constant 9.99999997E-7 : f32
    %15 = vector.broadcast %cst_6 : f32 to vector<1x16x16xf32>
    %16 = arith.addf %12, %15 : vector<1x16x16xf32>
    %17 = math.rsqrt %16 : vector<1x16x16xf32>
    %18 = vector.broadcast %17 : vector<1x16x16xf32> to vector<4x16x16xf32>
    %19 = arith.mulf %14, %18 : vector<4x16x16xf32>
    %c0_7 = arith.constant 0 : index
    %c0_8 = arith.constant 0 : index
    %c0_9 = arith.constant 0 : index
    %20 = vector.load %arg2[%c0_7, %c0_8, %c0_9] : memref<4x1x1xf32, #tpu.memory_space<vmem>>, vector<4x1x1xf32>
    %21 = vector.broadcast %20 : vector<4x1x1xf32> to vector<4x16x16xf32>
    %22 = arith.mulf %21, %19 : vector<4x16x16xf32>
    %c0_10 = arith.constant 0 : index
    %c0_11 = arith.constant 0 : index
    %c0_12 = arith.constant 0 : index
    %23 = vector.load %arg3[%c0_10, %c0_11, %c0_12] : memref<4x1x1xf32, #tpu.memory_space<vmem>>, vector<4x1x1xf32>
    %24 = vector.broadcast %23 : vector<4x1x1xf32> to vector<4x16x16xf32>
    %25 = arith.addf %22, %24 : vector<4x16x16xf32>
    %26 = vector.extract_strided_slice %25 {offsets = [0, 0, 0], sizes = [2, 16, 16], strides = [1, 1, 1]} : vector<4x16x16xf32> to vector<2x16x16xf32>
    %27 = vector.extract_strided_slice %25 {offsets = [2, 0, 0], sizes = [2, 16, 16], strides = [1, 1, 1]} : vector<4x16x16xf32> to vector<2x16x16xf32>
    %28 = vector.extract_strided_slice %27 {offsets = [0, 0, 0], sizes = [1, 16, 16], strides = [1, 1, 1]} : vector<2x16x16xf32> to vector<1x16x16xf32>
    %29 = vector.shape_cast %28 : vector<1x16x16xf32> to vector<16x16xf32>
    %30 = vector.extract_strided_slice %27 {offsets = [1, 0, 0], sizes = [1, 16, 16], strides = [1, 1, 1]} : vector<2x16x16xf32> to vector<1x16x16xf32>
    %31 = vector.shape_cast %30 : vector<1x16x16xf32> to vector<16x16xf32>
    %32 = tpu.concatenate %29, %31 in 0 : vector<16x16xf32>, vector<16x16xf32> -> vector<32x16xf32>
    %c0_13 = arith.constant 0 : index
    %c0_14 = arith.constant 0 : index
    %33 = vector.load %arg7[%c0_13, %c0_14] : memref<16x18xf32, #tpu.memory_space<vmem>>, vector<16x18xf32>
    %cst_15 = arith.constant dense<0.000000e+00> : vector<32x18xf32>
    %34 = tpu.matmul %32, %33, %cst_15 {dimension_numbers = #tpu.dot_dimension_numbers<[1], [0], [0], [1], [0, 0, 1, 1], [], []>} : vector<32x16xf32>, vector<16x18xf32>, vector<32x18xf32> -> vector<32x18xf32>
    %35 = vector.extract_strided_slice %34 {offsets = [0, 0], sizes = [16, 9], strides = [1, 1]} : vector<32x18xf32> to vector<16x9xf32>
    %36 = vector.extract_strided_slice %34 {offsets = [16, 0], sizes = [16, 9], strides = [1, 1]} : vector<32x18xf32> to vector<16x9xf32>
    %37 = vector.extract_strided_slice %34 {offsets = [0, 9], sizes = [16, 9], strides = [1, 1]} : vector<32x18xf32> to vector<16x9xf32>
    %38 = vector.extract_strided_slice %34 {offsets = [16, 9], sizes = [16, 9], strides = [1, 1]} : vector<32x18xf32> to vector<16x9xf32>
    %39 = tpu.concatenate %35, %36, %37, %38 in 1 : vector<16x9xf32>, vector<16x9xf32>, vector<16x9xf32>, vector<16x9xf32> -> vector<16x36xf32>
    %c0_16 = arith.constant 0 : index
    %c0_17 = arith.constant 0 : index
    %40 = vector.load %arg8[%c0_16, %c0_17] : memref<32x16xf32, #tpu.memory_space<vmem>>, vector<32x16xf32>
    %cst_18 = arith.constant dense<0.000000e+00> : vector<32x36xf32>
    %41 = tpu.matmul %40, %39, %cst_18 {dimension_numbers = #tpu.dot_dimension_numbers<[1], [0], [0], [1], [0, 0, 1, 1], [], []>} : vector<32x16xf32>, vector<16x36xf32>, vector<32x36xf32> -> vector<32x36xf32>
    %42 = vector.extract_strided_slice %41 {offsets = [0, 0], sizes = [16, 18], strides = [1, 1]} : vector<32x36xf32> to vector<16x18xf32>
    %43 = vector.extract_strided_slice %41 {offsets = [16, 18], sizes = [16, 18], strides = [1, 1]} : vector<32x36xf32> to vector<16x18xf32>
    %44 = arith.subf %42, %43 : vector<16x18xf32>
    %45 = vector.extract_strided_slice %41 {offsets = [0, 18], sizes = [16, 18], strides = [1, 1]} : vector<32x36xf32> to vector<16x18xf32>
    %46 = vector.extract_strided_slice %41 {offsets = [16, 0], sizes = [16, 18], strides = [1, 1]} : vector<32x36xf32> to vector<16x18xf32>
    %47 = arith.addf %45, %46 : vector<16x18xf32>
    %c0_19 = arith.constant 0 : index
    %c0_20 = arith.constant 0 : index
    %48 = vector.load %arg5[%c0_19, %c0_20] : memref<16x18xf32, #tpu.memory_space<vmem>>, vector<16x18xf32>
    %c0_21 = arith.constant 0 : index
    %c0_22 = arith.constant 0 : index
    %49 = vector.load %arg6[%c0_21, %c0_22] : memref<16x18xf32, #tpu.memory_space<vmem>>, vector<16x18xf32>
    %50 = arith.mulf %44, %48 : vector<16x18xf32>
    %51 = arith.mulf %47, %49 : vector<16x18xf32>
    %52 = arith.subf %50, %51 : vector<16x18xf32>
    %53 = arith.mulf %44, %49 : vector<16x18xf32>
    %54 = arith.mulf %47, %48 : vector<16x18xf32>
    %55 = arith.addf %53, %54 : vector<16x18xf32>
    %c0_23 = arith.constant 0 : index
    %c0_24 = arith.constant 0 : index
    %56 = vector.load %arg9[%c0_23, %c0_24] : memref<32x16xf32, #tpu.memory_space<vmem>>, vector<32x16xf32>
    %57 = tpu.concatenate %52, %55 in 1 : vector<16x18xf32>, vector<16x18xf32> -> vector<16x36xf32>
    %cst_25 = arith.constant dense<0.000000e+00> : vector<32x36xf32>
    %58 = tpu.matmul %56, %57, %cst_25 {dimension_numbers = #tpu.dot_dimension_numbers<[1], [0], [0], [1], [0, 0, 1, 1], [], []>} : vector<32x16xf32>, vector<16x36xf32>, vector<32x36xf32> -> vector<32x36xf32>
    %59 = vector.extract_strided_slice %58 {offsets = [0, 0], sizes = [16, 18], strides = [1, 1]} : vector<32x36xf32> to vector<16x18xf32>
    %60 = vector.extract_strided_slice %58 {offsets = [16, 18], sizes = [16, 18], strides = [1, 1]} : vector<32x36xf32> to vector<16x18xf32>
    %61 = arith.subf %59, %60 : vector<16x18xf32>
    %62 = vector.extract_strided_slice %58 {offsets = [0, 18], sizes = [16, 18], strides = [1, 1]} : vector<32x36xf32> to vector<16x18xf32>
    %63 = vector.extract_strided_slice %58 {offsets = [16, 0], sizes = [16, 18], strides = [1, 1]} : vector<32x36xf32> to vector<16x18xf32>
    %64 = arith.addf %62, %63 : vector<16x18xf32>
    %65 = vector.extract_strided_slice %61 {offsets = [0, 0], sizes = [16, 9], strides = [1, 1]} : vector<16x18xf32> to vector<16x9xf32>
    %66 = vector.extract_strided_slice %61 {offsets = [0, 9], sizes = [16, 9], strides = [1, 1]} : vector<16x18xf32> to vector<16x9xf32>
    %67 = tpu.concatenate %65, %66 in 0 : vector<16x9xf32>, vector<16x9xf32> -> vector<32x9xf32>
    %68 = vector.extract_strided_slice %64 {offsets = [0, 0], sizes = [16, 9], strides = [1, 1]} : vector<16x18xf32> to vector<16x9xf32>
    %69 = vector.extract_strided_slice %64 {offsets = [0, 9], sizes = [16, 9], strides = [1, 1]} : vector<16x18xf32> to vector<16x9xf32>
    %70 = tpu.concatenate %68, %69 in 0 : vector<16x9xf32>, vector<16x9xf32> -> vector<32x9xf32>
    %71 = tpu.concatenate %67, %70 in 1 : vector<32x9xf32>, vector<32x9xf32> -> vector<32x18xf32>
    %c0_26 = arith.constant 0 : index
    %c0_27 = arith.constant 0 : index
    %72 = vector.load %arg10[%c0_26, %c0_27] : memref<18x16xf32, #tpu.memory_space<vmem>>, vector<18x16xf32>
    %cst_28 = arith.constant dense<0.000000e+00> : vector<32x16xf32>
    %73 = tpu.matmul %71, %72, %cst_28 {dimension_numbers = #tpu.dot_dimension_numbers<[1], [0], [0], [1], [0, 0, 1, 1], [], []>} : vector<32x18xf32>, vector<18x16xf32>, vector<32x16xf32> -> vector<32x16xf32>
    %74 = vector.extract_strided_slice %73 {offsets = [0, 0], sizes = [16, 16], strides = [1, 1]} : vector<32x16xf32> to vector<16x16xf32>
    %75 = vector.extract_strided_slice %73 {offsets = [16, 0], sizes = [16, 16], strides = [1, 1]} : vector<32x16xf32> to vector<16x16xf32>
    %76 = vector.shape_cast %74 : vector<16x16xf32> to vector<1x16x16xf32>
    %77 = vector.shape_cast %75 : vector<16x16xf32> to vector<1x16x16xf32>
    %78 = tpu.concatenate %76, %77 in 0 : vector<1x16x16xf32>, vector<1x16x16xf32> -> vector<2x16x16xf32>
    %cst_29 = arith.constant 0.000000e+00 : f32
    %79 = vector.broadcast %cst_29 : f32 to vector<2x1x16xf32>
    %cst_30 = arith.constant 0.000000e+00 : f32
    %80 = vector.broadcast %cst_30 : f32 to vector<2x18x1xf32>
    %81 = tpu.concatenate %79, %26, %79 in 1 : vector<2x1x16xf32>, vector<2x16x16xf32>, vector<2x1x16xf32> -> vector<2x18x16xf32>
    %82 = tpu.concatenate %80, %81, %80 in 2 : vector<2x18x1xf32>, vector<2x18x16xf32>, vector<2x18x1xf32> -> vector<2x18x18xf32>
    %cst_31 = arith.constant 0.000000e+00 : f32
    %83 = vector.broadcast %cst_31 : f32 to vector<2x16x16xf32>
    %c0_32 = arith.constant 0 : index
    %c0_33 = arith.constant 0 : index
    %c0_34 = arith.constant 0 : index
    %c0_35 = arith.constant 0 : index
    %84 = vector.load %arg4[%c0_32, %c0_33, %c0_34, %c0_35] : memref<9x2x1x1xf32, #tpu.memory_space<vmem>>, vector<1x2x1x1xf32>
    %85 = vector.shape_cast %84 : vector<1x2x1x1xf32> to vector<2x1x1xf32>
    %86 = vector.extract_strided_slice %82 {offsets = [0, 0, 0], sizes = [2, 16, 16], strides = [1, 1, 1]} : vector<2x18x18xf32> to vector<2x16x16xf32>
    %87 = vector.broadcast %85 : vector<2x1x1xf32> to vector<2x16x16xf32>
    %88 = arith.mulf %87, %86 : vector<2x16x16xf32>
    %89 = arith.addf %83, %88 : vector<2x16x16xf32>
    %c1 = arith.constant 1 : index
    %c0_36 = arith.constant 0 : index
    %c0_37 = arith.constant 0 : index
    %c0_38 = arith.constant 0 : index
    %90 = vector.load %arg4[%c1, %c0_36, %c0_37, %c0_38] : memref<9x2x1x1xf32, #tpu.memory_space<vmem>>, vector<1x2x1x1xf32>
    %91 = vector.shape_cast %90 : vector<1x2x1x1xf32> to vector<2x1x1xf32>
    %92 = vector.extract_strided_slice %82 {offsets = [0, 0, 1], sizes = [2, 16, 16], strides = [1, 1, 1]} : vector<2x18x18xf32> to vector<2x16x16xf32>
    %93 = vector.broadcast %91 : vector<2x1x1xf32> to vector<2x16x16xf32>
    %94 = arith.mulf %93, %92 : vector<2x16x16xf32>
    %95 = arith.addf %89, %94 : vector<2x16x16xf32>
    %c2 = arith.constant 2 : index
    %c0_39 = arith.constant 0 : index
    %c0_40 = arith.constant 0 : index
    %c0_41 = arith.constant 0 : index
    %96 = vector.load %arg4[%c2, %c0_39, %c0_40, %c0_41] : memref<9x2x1x1xf32, #tpu.memory_space<vmem>>, vector<1x2x1x1xf32>
    %97 = vector.shape_cast %96 : vector<1x2x1x1xf32> to vector<2x1x1xf32>
    %98 = vector.extract_strided_slice %82 {offsets = [0, 0, 2], sizes = [2, 16, 16], strides = [1, 1, 1]} : vector<2x18x18xf32> to vector<2x16x16xf32>
    %99 = vector.broadcast %97 : vector<2x1x1xf32> to vector<2x16x16xf32>
    %100 = arith.mulf %99, %98 : vector<2x16x16xf32>
    %101 = arith.addf %95, %100 : vector<2x16x16xf32>
    %c3 = arith.constant 3 : index
    %c0_42 = arith.constant 0 : index
    %c0_43 = arith.constant 0 : index
    %c0_44 = arith.constant 0 : index
    %102 = vector.load %arg4[%c3, %c0_42, %c0_43, %c0_44] : memref<9x2x1x1xf32, #tpu.memory_space<vmem>>, vector<1x2x1x1xf32>
    %103 = vector.shape_cast %102 : vector<1x2x1x1xf32> to vector<2x1x1xf32>
    %104 = vector.extract_strided_slice %82 {offsets = [0, 1, 0], sizes = [2, 16, 16], strides = [1, 1, 1]} : vector<2x18x18xf32> to vector<2x16x16xf32>
    %105 = vector.broadcast %103 : vector<2x1x1xf32> to vector<2x16x16xf32>
    %106 = arith.mulf %105, %104 : vector<2x16x16xf32>
    %107 = arith.addf %101, %106 : vector<2x16x16xf32>
    %c4 = arith.constant 4 : index
    %c0_45 = arith.constant 0 : index
    %c0_46 = arith.constant 0 : index
    %c0_47 = arith.constant 0 : index
    %108 = vector.load %arg4[%c4, %c0_45, %c0_46, %c0_47] : memref<9x2x1x1xf32, #tpu.memory_space<vmem>>, vector<1x2x1x1xf32>
    %109 = vector.shape_cast %108 : vector<1x2x1x1xf32> to vector<2x1x1xf32>
    %110 = vector.extract_strided_slice %82 {offsets = [0, 1, 1], sizes = [2, 16, 16], strides = [1, 1, 1]} : vector<2x18x18xf32> to vector<2x16x16xf32>
    %111 = vector.broadcast %109 : vector<2x1x1xf32> to vector<2x16x16xf32>
    %112 = arith.mulf %111, %110 : vector<2x16x16xf32>
    %113 = arith.addf %107, %112 : vector<2x16x16xf32>
    %c5 = arith.constant 5 : index
    %c0_48 = arith.constant 0 : index
    %c0_49 = arith.constant 0 : index
    %c0_50 = arith.constant 0 : index
    %114 = vector.load %arg4[%c5, %c0_48, %c0_49, %c0_50] : memref<9x2x1x1xf32, #tpu.memory_space<vmem>>, vector<1x2x1x1xf32>
    %115 = vector.shape_cast %114 : vector<1x2x1x1xf32> to vector<2x1x1xf32>
    %116 = vector.extract_strided_slice %82 {offsets = [0, 1, 2], sizes = [2, 16, 16], strides = [1, 1, 1]} : vector<2x18x18xf32> to vector<2x16x16xf32>
    %117 = vector.broadcast %115 : vector<2x1x1xf32> to vector<2x16x16xf32>
    %118 = arith.mulf %117, %116 : vector<2x16x16xf32>
    %119 = arith.addf %113, %118 : vector<2x16x16xf32>
    %c6 = arith.constant 6 : index
    %c0_51 = arith.constant 0 : index
    %c0_52 = arith.constant 0 : index
    %c0_53 = arith.constant 0 : index
    %120 = vector.load %arg4[%c6, %c0_51, %c0_52, %c0_53] : memref<9x2x1x1xf32, #tpu.memory_space<vmem>>, vector<1x2x1x1xf32>
    %121 = vector.shape_cast %120 : vector<1x2x1x1xf32> to vector<2x1x1xf32>
    %122 = vector.extract_strided_slice %82 {offsets = [0, 2, 0], sizes = [2, 16, 16], strides = [1, 1, 1]} : vector<2x18x18xf32> to vector<2x16x16xf32>
    %123 = vector.broadcast %121 : vector<2x1x1xf32> to vector<2x16x16xf32>
    %124 = arith.mulf %123, %122 : vector<2x16x16xf32>
    %125 = arith.addf %119, %124 : vector<2x16x16xf32>
    %c7 = arith.constant 7 : index
    %c0_54 = arith.constant 0 : index
    %c0_55 = arith.constant 0 : index
    %c0_56 = arith.constant 0 : index
    %126 = vector.load %arg4[%c7, %c0_54, %c0_55, %c0_56] : memref<9x2x1x1xf32, #tpu.memory_space<vmem>>, vector<1x2x1x1xf32>
    %127 = vector.shape_cast %126 : vector<1x2x1x1xf32> to vector<2x1x1xf32>
    %128 = vector.extract_strided_slice %82 {offsets = [0, 2, 1], sizes = [2, 16, 16], strides = [1, 1, 1]} : vector<2x18x18xf32> to vector<2x16x16xf32>
    %129 = vector.broadcast %127 : vector<2x1x1xf32> to vector<2x16x16xf32>
    %130 = arith.mulf %129, %128 : vector<2x16x16xf32>
    %131 = arith.addf %125, %130 : vector<2x16x16xf32>
    %c8 = arith.constant 8 : index
    %c0_57 = arith.constant 0 : index
    %c0_58 = arith.constant 0 : index
    %c0_59 = arith.constant 0 : index
    %132 = vector.load %arg4[%c8, %c0_57, %c0_58, %c0_59] : memref<9x2x1x1xf32, #tpu.memory_space<vmem>>, vector<1x2x1x1xf32>
    %133 = vector.shape_cast %132 : vector<1x2x1x1xf32> to vector<2x1x1xf32>
    %134 = vector.extract_strided_slice %82 {offsets = [0, 2, 2], sizes = [2, 16, 16], strides = [1, 1, 1]} : vector<2x18x18xf32> to vector<2x16x16xf32>
    %135 = vector.broadcast %133 : vector<2x1x1xf32> to vector<2x16x16xf32>
    %136 = arith.mulf %135, %134 : vector<2x16x16xf32>
    %137 = arith.addf %131, %136 : vector<2x16x16xf32>
    %138 = vector.shape_cast %137 : vector<2x16x16xf32> to vector<2x1x16x16xf32>
    %139 = vector.shape_cast %78 : vector<2x16x16xf32> to vector<2x1x16x16xf32>
    %140 = tpu.concatenate %138, %139 in 1 : vector<2x1x16x16xf32>, vector<2x1x16x16xf32> -> vector<2x2x16x16xf32>
    %141 = vector.shape_cast %140 : vector<2x2x16x16xf32> to vector<4x16x16xf32>
    %cst_60 = arith.constant dense<0.000000e+00> : vector<16x16xf32>
    %142 = vector.multi_reduction <add>, %141, %cst_60 [0] : vector<4x16x16xf32> to vector<16x16xf32>
    %143 = vector.shape_cast %142 : vector<16x16xf32> to vector<1x16x16xf32>
    %cst_61 = arith.constant 4.000000e+00 : f32
    %144 = vector.broadcast %cst_61 : f32 to vector<1x16x16xf32>
    %145 = arith.divf %143, %144 : vector<1x16x16xf32>
    %146 = vector.broadcast %145 : vector<1x16x16xf32> to vector<4x16x16xf32>
    %147 = arith.subf %141, %146 : vector<4x16x16xf32>
    %148 = arith.mulf %147, %147 : vector<4x16x16xf32>
    %cst_62 = arith.constant dense<0.000000e+00> : vector<16x16xf32>
    %149 = vector.multi_reduction <add>, %148, %cst_62 [0] : vector<4x16x16xf32> to vector<16x16xf32>
    %150 = vector.shape_cast %149 : vector<16x16xf32> to vector<1x16x16xf32>
    %cst_63 = arith.constant 4.000000e+00 : f32
    %151 = vector.broadcast %cst_63 : f32 to vector<1x16x16xf32>
    %152 = arith.divf %150, %151 : vector<1x16x16xf32>
    %153 = vector.broadcast %145 : vector<1x16x16xf32> to vector<4x16x16xf32>
    %154 = arith.subf %141, %153 : vector<4x16x16xf32>
    %cst_64 = arith.constant 9.99999997E-7 : f32
    %155 = vector.broadcast %cst_64 : f32 to vector<1x16x16xf32>
    %156 = arith.addf %152, %155 : vector<1x16x16xf32>
    %157 = math.rsqrt %156 : vector<1x16x16xf32>
    %158 = vector.broadcast %157 : vector<1x16x16xf32> to vector<4x16x16xf32>
    %159 = arith.mulf %154, %158 : vector<4x16x16xf32>
    %c0_65 = arith.constant 0 : index
    %c0_66 = arith.constant 0 : index
    %c0_67 = arith.constant 0 : index
    %160 = vector.load %arg11[%c0_65, %c0_66, %c0_67] : memref<4x1x1xf32, #tpu.memory_space<vmem>>, vector<4x1x1xf32>
    %161 = vector.broadcast %160 : vector<4x1x1xf32> to vector<4x16x16xf32>
    %162 = arith.mulf %161, %159 : vector<4x16x16xf32>
    %c0_68 = arith.constant 0 : index
    %c0_69 = arith.constant 0 : index
    %c0_70 = arith.constant 0 : index
    %163 = vector.load %arg12[%c0_68, %c0_69, %c0_70] : memref<4x1x1xf32, #tpu.memory_space<vmem>>, vector<4x1x1xf32>
    %164 = vector.broadcast %163 : vector<4x1x1xf32> to vector<4x16x16xf32>
    %165 = arith.addf %162, %164 : vector<4x16x16xf32>
    %c0_71 = arith.constant 0 : index
    %c0_72 = arith.constant 0 : index
    %c0_73 = arith.constant 0 : index
    %c0_74 = arith.constant 0 : index
    %166 = vector.load %arg13[%c0_71, %c0_72, %c0_73, %c0_74] : memref<1x4x16x16xf32, #tpu.memory_space<vmem>>, vector<1x4x16x16xf32>
    %167 = vector.shape_cast %166 : vector<1x4x16x16xf32> to vector<4x16x16xf32>
    %168 = vector.shape_cast %165 : vector<4x16x16xf32> to vector<1x4x16x16xf32>
    tpu.vector_store %arg13[%c0_71, %c0_72, %c0_73, %c0_74], %168 {strides = array<i32>} : memref<1x4x16x16xf32, #tpu.memory_space<vmem>>, vector<1x4x16x16xf32>,
    return
  }
  func.func @transform_0(%arg0: i32) -> (i32, i32, i32, i32) {
    %c0_i32 = arith.constant 0 : i32
    %c0_i32_0 = arith.constant 0 : i32
    %c0_i32_1 = arith.constant 0 : i32
    %c0_i32_2 = arith.constant 0 : i32
    return %arg0, %c0_i32, %c0_i32_0, %c0_i32_1 : i32, i32, i32, i32
  }
  func.func @transform_1(%arg0: i32) -> (i32, i32, i32) {
    %c0_i32 = arith.constant 0 : i32
    %c0_i32_0 = arith.constant 0 : i32
    %c0_i32_1 = arith.constant 0 : i32
    %c0_i32_2 = arith.constant 0 : i32
    return %c0_i32, %c0_i32_0, %c0_i32_1 : i32, i32, i32
  }
  func.func @transform_2(%arg0: i32) -> (i32, i32, i32) {
    %c0_i32 = arith.constant 0 : i32
    %c0_i32_0 = arith.constant 0 : i32
    %c0_i32_1 = arith.constant 0 : i32
    %c0_i32_2 = arith.constant 0 : i32
    return %c0_i32, %c0_i32_0, %c0_i32_1 : i32, i32, i32
  }
  func.func @transform_3(%arg0: i32) -> (i32, i32, i32, i32) {
    %c0_i32 = arith.constant 0 : i32
    %c0_i32_0 = arith.constant 0 : i32
    %c0_i32_1 = arith.constant 0 : i32
    %c0_i32_2 = arith.constant 0 : i32
    %c0_i32_3 = arith.constant 0 : i32
    return %c0_i32, %c0_i32_0, %c0_i32_1, %c0_i32_2 : i32, i32, i32, i32
  }
  func.func @transform_4(%arg0: i32) -> (i32, i32) {
    %c0_i32 = arith.constant 0 : i32
    %c0_i32_0 = arith.constant 0 : i32
    %c0_i32_1 = arith.constant 0 : i32
    return %c0_i32, %c0_i32_0 : i32, i32
  }
  func.func @transform_5(%arg0: i32) -> (i32, i32) {
    %c0_i32 = arith.constant 0 : i32
    %c0_i32_0 = arith.constant 0 : i32
    %c0_i32_1 = arith.constant 0 : i32
    return %c0_i32, %c0_i32_0 : i32, i32
  }
  func.func @transform_6(%arg0: i32) -> (i32, i32) {
    %c0_i32 = arith.constant 0 : i32
    %c0_i32_0 = arith.constant 0 : i32
    %c0_i32_1 = arith.constant 0 : i32
    return %c0_i32, %c0_i32_0 : i32, i32
  }
  func.func @transform_7(%arg0: i32) -> (i32, i32) {
    %c0_i32 = arith.constant 0 : i32
    %c0_i32_0 = arith.constant 0 : i32
    %c0_i32_1 = arith.constant 0 : i32
    return %c0_i32, %c0_i32_0 : i32, i32
  }
  func.func @transform_8(%arg0: i32) -> (i32, i32) {
    %c0_i32 = arith.constant 0 : i32
    %c0_i32_0 = arith.constant 0 : i32
    %c0_i32_1 = arith.constant 0 : i32
    return %c0_i32, %c0_i32_0 : i32, i32
  }
  func.func @transform_9(%arg0: i32) -> (i32, i32) {
    %c0_i32 = arith.constant 0 : i32
    %c0_i32_0 = arith.constant 0 : i32
    %c0_i32_1 = arith.constant 0 : i32
    return %c0_i32, %c0_i32_0 : i32, i32
  }
  func.func @transform_10(%arg0: i32) -> (i32, i32, i32) {
    %c0_i32 = arith.constant 0 : i32
    %c0_i32_0 = arith.constant 0 : i32
    %c0_i32_1 = arith.constant 0 : i32
    %c0_i32_2 = arith.constant 0 : i32
    return %c0_i32, %c0_i32_0, %c0_i32_1 : i32, i32, i32
  }
  func.func @transform_11(%arg0: i32) -> (i32, i32, i32) {
    %c0_i32 = arith.constant 0 : i32
    %c0_i32_0 = arith.constant 0 : i32
    %c0_i32_1 = arith.constant 0 : i32
    %c0_i32_2 = arith.constant 0 : i32
    return %c0_i32, %c0_i32_0, %c0_i32_1 : i32, i32, i32
  }
  func.func @transform_12(%arg0: i32) -> (i32, i32, i32, i32) {
    %c0_i32 = arith.constant 0 : i32
    %c0_i32_0 = arith.constant 0 : i32
    %c0_i32_1 = arith.constant 0 : i32
    %c0_i32_2 = arith.constant 0 : i32
    return %arg0, %c0_i32, %c0_i32_0, %c0_i32_1 : i32, i32, i32, i32
  }
}

</mosaic_0001>

<llo_original>
// kernel: tpu_custom_call.1
$region0: #{tpu_custom_call.1}
  #allocation0 [shape = 'u32[]', space=smem, size = 0x4, offset = 0x4, fixed_abs, tag = 'smem constant byte address 0x4 - core index']
  #allocation1 [shape = 'u32[144,128]{1,0:T(1,128)}', space=vmem, size = 0x12000, scoped, tag = 'internal scratch']
  %s0 = inlined_call_operand.vmem [shape: f32[2,4,16,16], index: 0, kind: input, shape index: {}]
  %s1 = inlined_call_operand.vmem [shape: f32[4,1,1], index: 1, kind: input, shape index: {}]
  %s2 = inlined_call_operand.vmem [shape: f32[4,1,1], index: 2, kind: input, shape index: {}]
  %s3 = inlined_call_operand.vmem [shape: f32[9,2,1,1], index: 3, kind: input, shape index: {}]
  %s4 = inlined_call_operand.hbm [shape: f32[16,18], index: 4, kind: input, shape index: {}]
  %s5 = inlined_call_operand.hbm [shape: f32[16,18], index: 5, kind: input, shape index: {}]
  %s6 = inlined_call_operand.hbm [shape: f32[16,18], index: 6, kind: input, shape index: {}]
  %s7 = inlined_call_operand.vmem [shape: f32[32,16], index: 7, kind: input, shape index: {}]
  %s8 = inlined_call_operand.vmem [shape: f32[32,16], index: 8, kind: input, shape index: {}]
  %s9 = inlined_call_operand.vmem [shape: f32[18,16], index: 9, kind: input, shape index: {}]
  %s10 = inlined_call_operand.vmem [shape: f32[4,1,1], index: 10, kind: input, shape index: {}]
  %s11 = inlined_call_operand.vmem [shape: f32[4,1,1], index: 11, kind: input, shape index: {}]
  %s12 = inlined_call_operand.hbm [shape: f32[2,4,16,16], index: 12, kind: output, shape index: {}]
  %s13 = sld [smem:[#allocation0]]
  $region93: #{tpu_custom_call.1} parent=0
    _
  %s15 = ssub.s32 1, %s13
  %s16 = scalar_select 0, %s15, %s13
  $region1: #{tpu_custom_call.1} parent=0
    #allocation2 [shape = 'u8[8192]{0}', space=vmem, size = 0x2000, scoped, tag = 'input window, operand 4, single buffered']
    #allocation3 [shape = 's32[2]{0}', space=sflag, size = 0x8, scoped, tag = 'scoped memory for tpu_custom_call.1']
    #allocation4 [shape = 's32[2]{0}', space=sflag, size = 0x8, scoped, tag = 'scoped memory for tpu_custom_call.1']
    #allocation5 [shape = 'u8[8192]{0}', space=vmem, size = 0x2000, scoped, tag = 'input window, operand 5, single buffered']
    #allocation6 [shape = 's32[1]{0}', space=sflag, size = 0x4, scoped, tag = 'scoped memory for tpu_custom_call.1']
    #allocation7 [shape = 'u8[8192]{0}', space=vmem, size = 0x2000, scoped, tag = 'input window, operand 6, single buffered']
    #allocation8 [shape = 'u8[65536]{0}', space=vmem, size = 0x10000, scoped, tag = 'output window, operand 0']
    %17 = vsyncpa [#allocation3], 0
    %18 = vsyncpa [#allocation6], 0
    %19 = vsyncpa [#allocation4], 0
    %s20 = scalar_lea.sflag [#allocation4], 1
    %21 = vsyncpa %s20, 0
    loop: start=0, step=1, limit=4
    $region2: #{tpu_custom_call.1} parent=1 // loop_pre_header
      _
    $region3: #{tpu_custom_call.1} parent=1 // loop_header
      %s23 = sphi 0, %s27
      %p24 = scmp.ge.s32.totalorder %s23, 4
      %s33 = sphi 0, %s35
      %s36 = sphi 0, %s33
      %s37 = sphi 0, %s36
      %s53 = sphi 0, %s37
      %s57 = sphi 0, %s57
      %s59 = sphi 0, %s57
      %s60 = sphi 0, %s59
      %s74 = sphi 0, %s60
      %s78 = sphi 0, %s78
      %s80 = sphi 0, %s78
      %s81 = sphi 0, %s80
      %s95 = sphi 0, %s81
      %s99 = sphi 0, %s99
      %s101 = sphi 0, %s99
      %s102 = sphi 0, %s101
      %s116 = sphi 0, %s102
      %s120 = sphi 0, %s120
      %s122 = sphi 0, %s120
      %s123 = sphi 0, %s122
      %s137 = sphi 0, %s123
      %s141 = sphi 0, %s141
      %s143 = sphi 0, %s141
      %s144 = sphi 0, %s143
      %s158 = sphi 0, %s144
      %s162 = sphi 0, %s162
      %s164 = sphi 0, %s162
      %s165 = sphi 0, %s164
      %s179 = sphi 0, %s165
      %s183 = sphi 0, %s183
      %s185 = sphi 0, %s183
      %s186 = sphi 0, %s185
      %s200 = sphi 0, %s186
      %s204 = sphi 0, %s204
      %s206 = sphi 0, %s204
      %s207 = sphi 0, %s206
      %s221 = sphi 0, %s207
      %s225 = sphi 0, %s225
      %s227 = sphi 0, %s225
      %s228 = sphi 0, %s227
      %s242 = sphi 0, %s228
      %s246 = sphi 0, %s246
      %s248 = sphi 0, %s246
      %s249 = sphi 0, %s248
      %s263 = sphi 0, %s249
      %s267 = sphi 0, %s267
      %s269 = sphi 0, %s267
      %s270 = sphi 0, %s269
      %s284 = sphi 0, %s270
      %s290 = sphi 0, %s292
      %s293 = sphi 0, %s290
      %s294 = sphi 0, %s293
      %s310 = sphi 0, %s294
    $region4: #{tpu_custom_call.1} parent=1 // loop_header_branch
      %26 = sbr.rel (%p24) target = $region8
    $region5: #{tpu_custom_call.1} parent=1 // loop_body
      %s28 = ssub.s32 %s23, 1
      %s29 = ssub.s32 %s23, 2
      %s30 = sadd.s32 %s23, 1
      %s31 = ssub.s32 %s23, %s30
      %p32 = scmp.eq.s32.totalorder %s31, 0
      %s34 = sadd.s32 %s33, 1
      %s35 = scalar_select %p32, %s33, %s34
      %p38 = pneg %p32
      %p39 = scmp.eq.s32.totalorder %s23, 1
      %p40 = por %p38, %p39
      %p41 = scmp.ne.s32.totalorder %s33, %s36
      %p42 = scmp.eq.s32.totalorder %s23, 0
      %p43 = por %p41, %p42
      %p44 = scmp.ne.s32.totalorder %s33, %s36
      %p45 = scmp.eq.s32.totalorder %s28, 1
      %p46 = por %p44, %p45
      %p47 = scmp.ne.s32.totalorder %s36, %s37
      %p48 = scmp.eq.s32.totalorder %s28, 0
      %p49 = por %p47, %p48
      %p50 = scmp.ne.s32.totalorder %s36, %s37
      %p51 = scmp.eq.s32.totalorder %s29, 1
      %p52 = por %p50, %p51
      %p54 = scmp.ne.s32.totalorder %s37, %s53
      %p55 = scmp.eq.s32.totalorder %s29, 0
      %p56 = por %p54, %p55
      %s58 = sadd.s32 %s57, 1
      %p61 = scmp.eq.s32.totalorder %s23, 1
      %p62 = scmp.ne.s32.totalorder %s57, %s59
      %p63 = scmp.eq.s32.totalorder %s23, 0
      %p64 = por %p62, %p63
      %p65 = scmp.ne.s32.totalorder %s57, %s59
      %p66 = scmp.eq.s32.totalorder %s28, 1
      %p67 = por %p65, %p66
      %p68 = scmp.ne.s32.totalorder %s59, %s60
      %p69 = scmp.eq.s32.totalorder %s28, 0
      %p70 = por %p68, %p69
      %p71 = scmp.ne.s32.totalorder %s59, %s60
      %p72 = scmp.eq.s32.totalorder %s29, 1
      %p73 = por %p71, %p72
      %p75 = scmp.ne.s32.totalorder %s60, %s74
      %p76 = scmp.eq.s32.totalorder %s29, 0
      %p77 = por %p75, %p76
      %s79 = sadd.s32 %s78, 1
      %p82 = scmp.eq.s32.totalorder %s23, 1
      %p83 = scmp.ne.s32.totalorder %s78, %s80
      %p84 = scmp.eq.s32.totalorder %s23, 0
      %p85 = por %p83, %p84
      %p86 = scmp.ne.s32.totalorder %s78, %s80
      %p87 = scmp.eq.s32.totalorder %s28, 1
      %p88 = por %p86, %p87
      %p89 = scmp.ne.s32.totalorder %s80, %s81
      %p90 = scmp.eq.s32.totalorder %s28, 0
      %p91 = por %p89, %p90
      %p92 = scmp.ne.s32.totalorder %s80, %s81
      %p93 = scmp.eq.s32.totalorder %s29, 1
      %p94 = por %p92, %p93
      %p96 = scmp.ne.s32.totalorder %s81, %s95
      %p97 = scmp.eq.s32.totalorder %s29, 0
      %p98 = por %p96, %p97
      %s100 = sadd.s32 %s99, 1
      %p103 = scmp.eq.s32.totalorder %s23, 1
      %p104 = scmp.ne.s32.totalorder %s99, %s101
      %p105 = scmp.eq.s32.totalorder %s23, 0
      %p106 = por %p104, %p105
      %p107 = scmp.ne.s32.totalorder %s99, %s101
      %p108 = scmp.eq.s32.totalorder %s28, 1
      %p109 = por %p107, %p108
      %p110 = scmp.ne.s32.totalorder %s101, %s102
      %p111 = scmp.eq.s32.totalorder %s28, 0
      %p112 = por %p110, %p111
      %p113 = scmp.ne.s32.totalorder %s101, %s102
      %p114 = scmp.eq.s32.totalorder %s29, 1
      %p115 = por %p113, %p114
      %p117 = scmp.ne.s32.totalorder %s102, %s116
      %p118 = scmp.eq.s32.totalorder %s29, 0
      %p119 = por %p117, %p118
      %s121 = sadd.s32 %s120, 1
      %p124 = scmp.eq.s32.totalorder %s23, 1
      %p125 = scmp.ne.s32.totalorder %s120, %s122
      %p126 = scmp.eq.s32.totalorder %s23, 0
      %p127 = por %p125, %p126
      %p128 = scmp.ne.s32.totalorder %s120, %s122
      %p129 = scmp.eq.s32.totalorder %s28, 1
      %p130 = por %p128, %p129
      %p131 = scmp.ne.s32.totalorder %s122, %s123
      %p132 = scmp.eq.s32.totalorder %s28, 0
      %p133 = por %p131, %p132
      %p134 = scmp.ne.s32.totalorder %s122, %s123
      %p135 = scmp.eq.s32.totalorder %s29, 1
      %p136 = por %p134, %p135
      %p138 = scmp.ne.s32.totalorder %s123, %s137
      %p139 = scmp.eq.s32.totalorder %s29, 0
      %p140 = por %p138, %p139
      %s142 = sadd.s32 %s141, 1
      %p145 = scmp.eq.s32.totalorder %s23, 1
      %p146 = scmp.ne.s32.totalorder %s141, %s143
      %p147 = scmp.eq.s32.totalorder %s23, 0
      %p148 = por %p146, %p147
      %p149 = scmp.ne.s32.totalorder %s141, %s143
      %p150 = scmp.eq.s32.totalorder %s28, 1
      %p151 = por %p149, %p150
      %p152 = scmp.ne.s32.totalorder %s143, %s144
      %p153 = scmp.eq.s32.totalorder %s28, 0
      %p154 = por %p152, %p153
      %p155 = scmp.ne.s32.totalorder %s143, %s144
      %p156 = scmp.eq.s32.totalorder %s29, 1
      %p157 = por %p155, %p156
      %p159 = scmp.ne.s32.totalorder %s144, %s158
      %p160 = scmp.eq.s32.totalorder %s29, 0
      %p161 = por %p159, %p160
      %s163 = sadd.s32 %s162, 1
      %p166 = scmp.eq.s32.totalorder %s23, 1
      %p167 = scmp.ne.s32.totalorder %s162, %s164
      %p168 = scmp.eq.s32.totalorder %s23, 0
      %p169 = por %p167, %p168
      %p170 = scmp.ne.s32.totalorder %s162, %s164
      %p171 = scmp.eq.s32.totalorder %s28, 1
      %p172 = por %p170, %p171
      %p173 = scmp.ne.s32.totalorder %s164, %s165
      %p174 = scmp.eq.s32.totalorder %s28, 0
      %p175 = por %p173, %p174
      %p176 = scmp.ne.s32.totalorder %s164, %s165
      %p177 = scmp.eq.s32.totalorder %s29, 1
      %p178 = por %p176, %p177
      %p180 = scmp.ne.s32.totalorder %s165, %s179
      %p181 = scmp.eq.s32.totalorder %s29, 0
      %p182 = por %p180, %p181
      %s184 = sadd.s32 %s183, 1
      %p187 = scmp.eq.s32.totalorder %s23, 1
      %p188 = scmp.ne.s32.totalorder %s183, %s185
      %p189 = scmp.eq.s32.totalorder %s23, 0
      %p190 = por %p188, %p189
      %p191 = scmp.ne.s32.totalorder %s183, %s185
      %p192 = scmp.eq.s32.totalorder %s28, 1
      %p193 = por %p191, %p192
      %p194 = scmp.ne.s32.totalorder %s185, %s186
      %p195 = scmp.eq.s32.totalorder %s28, 0
      %p196 = por %p194, %p195
      %p197 = scmp.ne.s32.totalorder %s185, %s186
      %p198 = scmp.eq.s32.totalorder %s29, 1
      %p199 = por %p197, %p198
      %p201 = scmp.ne.s32.totalorder %s186, %s200
      %p202 = scmp.eq.s32.totalorder %s29, 0
      %p203 = por %p201, %p202
      %s205 = sadd.s32 %s204, 1
      %p208 = scmp.eq.s32.totalorder %s23, 1
      %p209 = scmp.ne.s32.totalorder %s204, %s206
      %p210 = scmp.eq.s32.totalorder %s23, 0
      %p211 = por %p209, %p210
      %p212 = scmp.ne.s32.totalorder %s204, %s206
      %p213 = scmp.eq.s32.totalorder %s28, 1
      %p214 = por %p212, %p213
      %p215 = scmp.ne.s32.totalorder %s206, %s207
      %p216 = scmp.eq.s32.totalorder %s28, 0
      %p217 = por %p215, %p216
      %p218 = scmp.ne.s32.totalorder %s206, %s207
      %p219 = scmp.eq.s32.totalorder %s29, 1
      %p220 = por %p218, %p219
      %p222 = scmp.ne.s32.totalorder %s207, %s221
      %p223 = scmp.eq.s32.totalorder %s29, 0
      %p224 = por %p222, %p223
      %s226 = sadd.s32 %s225, 1
      %p229 = scmp.eq.s32.totalorder %s23, 1
      %p230 = scmp.ne.s32.totalorder %s225, %s227
      %p231 = scmp.eq.s32.totalorder %s23, 0
      %p232 = por %p230, %p231
      %p233 = scmp.ne.s32.totalorder %s225, %s227
      %p234 = scmp.eq.s32.totalorder %s28, 1
      %p235 = por %p233, %p234
      %p236 = scmp.ne.s32.totalorder %s227, %s228
      %p237 = scmp.eq.s32.totalorder %s28, 0
      %p238 = por %p236, %p237
      %p239 = scmp.ne.s32.totalorder %s227, %s228
      %p240 = scmp.eq.s32.totalorder %s29, 1
      %p241 = por %p239, %p240
      %p243 = scmp.ne.s32.totalorder %s228, %s242
      %p244 = scmp.eq.s32.totalorder %s29, 0
      %p245 = por %p243, %p244
      %s247 = sadd.s32 %s246, 1
      %p250 = scmp.eq.s32.totalorder %s23, 1
      %p251 = scmp.ne.s32.totalorder %s246, %s248
      %p252 = scmp.eq.s32.totalorder %s23, 0
      %p253 = por %p251, %p252
      %p254 = scmp.ne.s32.totalorder %s246, %s248
      %p255 = scmp.eq.s32.totalorder %s28, 1
      %p256 = por %p254, %p255
      %p257 = scmp.ne.s32.totalorder %s248, %s249
      %p258 = scmp.eq.s32.totalorder %s28, 0
      %p259 = por %p257, %p258
      %p260 = scmp.ne.s32.totalorder %s248, %s249
      %p261 = scmp.eq.s32.totalorder %s29, 1
      %p262 = por %p260, %p261
      %p264 = scmp.ne.s32.totalorder %s249, %s263
      %p265 = scmp.eq.s32.totalorder %s29, 0
      %p266 = por %p264, %p265
      %s268 = sadd.s32 %s267, 1
      %p271 = scmp.eq.s32.totalorder %s23, 1
      %p272 = scmp.ne.s32.totalorder %s267, %s269
      %p273 = scmp.eq.s32.totalorder %s23, 0
      %p274 = por %p272, %p273
      %p275 = scmp.ne.s32.totalorder %s267, %s269
      %p276 = scmp.eq.s32.totalorder %s28, 1
      %p277 = por %p275, %p276
      %p278 = scmp.ne.s32.totalorder %s269, %s270
      %p279 = scmp.eq.s32.totalorder %s28, 0
      %p280 = por %p278, %p279
      %p281 = scmp.ne.s32.totalorder %s269, %s270
      %p282 = scmp.eq.s32.totalorder %s29, 1
      %p283 = por %p281, %p282
      %p285 = scmp.ne.s32.totalorder %s270, %s284
      %p286 = scmp.eq.s32.totalorder %s29, 0
      %p287 = por %p285, %p286
      %s288 = ssub.s32 %s23, %s30
      %p289 = scmp.eq.s32.totalorder %s288, 0
      %s291 = sadd.s32 %s290, 1
      %s292 = scalar_select %p289, %s290, %s291
      %p295 = pneg %p289
      %p296 = scmp.eq.s32.totalorder %s23, 1
      %p297 = por %p295, %p296
      %p298 = scmp.ne.s32.totalorder %s290, %s293
      %p299 = scmp.eq.s32.totalorder %s23, 0
      %p300 = por %p298, %p299
      %p301 = scmp.ne.s32.totalorder %s290, %s293
      %p302 = scmp.eq.s32.totalorder %s28, 1
      %p303 = por %p301, %p302
      %p304 = scmp.ne.s32.totalorder %s293, %s294
      %p305 = scmp.eq.s32.totalorder %s28, 0
      %p306 = por %p304, %p305
      %p307 = scmp.ne.s32.totalorder %s293, %s294
      %p308 = scmp.eq.s32.totalorder %s29, 1
      %p309 = por %p307, %p308
      %p311 = scmp.ne.s32.totalorder %s294, %s310
      %p312 = scmp.eq.s32.totalorder %s29, 0
      %p313 = por %p311, %p312
      %p314 = scmp.le.s32.totalorder 1, %s23
      %p315 = scmp.lt.s32.totalorder %s23, 3
      %p316 = pnand %p314, %p315
      %p317 = pneg %p316
      // Predicated region
      $region9: #{tpu_custom_call.1} parent=5 // pred_check
        _
      $region10: #{tpu_custom_call.1} parent=5 // pred_check_branch
        %319 = sbr.rel (%p316) target = $region12
      $region11: #{tpu_custom_call.1} parent=5 // pred_region
        %s320 = ssub.s32 %s23, 1
        // Predicated region
        $region13: #{tpu_custom_call.1} parent=11 // pred_check
          %p321 = pneg %p70
        $region14: #{tpu_custom_call.1} parent=11 // pred_check_branch
          %323 = sbr.rel (%p321) target = $region16
        $region15: #{tpu_custom_call.1} parent=11 // pred_region
          _
        $region16: #{tpu_custom_call.1} parent=11 // pred_fallthru
          _
        // Predicated region
        $region17: #{tpu_custom_call.1} parent=11 // pred_check
          %p324 = pneg %p91
        $region18: #{tpu_custom_call.1} parent=11 // pred_check_branch
          %326 = sbr.rel (%p324) target = $region20
        $region19: #{tpu_custom_call.1} parent=11 // pred_region
          _
        $region20: #{tpu_custom_call.1} parent=11 // pred_fallthru
          _
        // Predicated region
        $region21: #{tpu_custom_call.1} parent=11 // pred_check
          %p327 = pneg %p112
        $region22: #{tpu_custom_call.1} parent=11 // pred_check_branch
          %329 = sbr.rel (%p327) target = $region24
        $region23: #{tpu_custom_call.1} parent=11 // pred_region
          _
        $region24: #{tpu_custom_call.1} parent=11 // pred_fallthru
          _
        // Predicated region
        $region25: #{tpu_custom_call.1} parent=11 // pred_check
          %p330 = pneg %p133
        $region26: #{tpu_custom_call.1} parent=11 // pred_check_branch
          %332 = sbr.rel (%p330) target = $region28
        $region27: #{tpu_custom_call.1} parent=11 // pred_region
          %s334 = ssub.s32 256, 256
          %335 = vsyncadd [#allocation3], %s334
          %s336 = sshll.u32 [#allocation2], 4
          %s337 = int_to_ptr.vmem [resolvable:$true] %s336
          %342 = dma.hbm_to_vmem [thread:$0]  %s4, 256, %s337, [#allocation3], 128, 128, 8
        $region28: #{tpu_custom_call.1} parent=11 // pred_fallthru
          _
        // Predicated region
        $region29: #{tpu_custom_call.1} parent=11 // pred_check
          %p343 = pneg %p154
        $region30: #{tpu_custom_call.1} parent=11 // pred_check_branch
          %345 = sbr.rel (%p343) target = $region32
        $region31: #{tpu_custom_call.1} parent=11 // pred_region
          %s347 = ssub.s32 256, 256
          %348 = vsyncadd [#allocation6], %s347
          %s349 = sshll.u32 [#allocation5], 4
          %s350 = int_to_ptr.vmem [resolvable:$true] %s349
          %355 = dma.hbm_to_vmem [thread:$0]  %s5, 256, %s350, [#allocation6], 128, 128, 8
        $region32: #{tpu_custom_call.1} parent=11 // pred_fallthru
          _
        // Predicated region
        $region33: #{tpu_custom_call.1} parent=11 // pred_check
          %p356 = pneg %p175
        $region34: #{tpu_custom_call.1} parent=11 // pred_check_branch
          %358 = sbr.rel (%p356) target = $region36
        $region35: #{tpu_custom_call.1} parent=11 // pred_region
          %s360 = ssub.s32 256, 256
          %361 = vsyncadd [#allocation6], %s360
          %s362 = sshll.u32 [#allocation7], 4
          %s363 = int_to_ptr.vmem [resolvable:$true] %s362
          %368 = dma.hbm_to_vmem [thread:$0]  %s6, 256, %s363, [#allocation6], 128, 128, 8
        $region36: #{tpu_custom_call.1} parent=11 // pred_fallthru
          _
        // Predicated region
        $region37: #{tpu_custom_call.1} parent=11 // pred_check
          %p369 = pneg %p196
        $region38: #{tpu_custom_call.1} parent=11 // pred_check_branch
          %371 = sbr.rel (%p369) target = $region40
        $region39: #{tpu_custom_call.1} parent=11 // pred_region
          _
        $region40: #{tpu_custom_call.1} parent=11 // pred_fallthru
          _
        // Predicated region
        $region41: #{tpu_custom_call.1} parent=11 // pred_check
          %p372 = pneg %p217
        $region42: #{tpu_custom_call.1} parent=11 // pred_check_branch
          %374 = sbr.rel (%p372) target = $region44
        $region43: #{tpu_custom_call.1} parent=11 // pred_region
          _
        $region44: #{tpu_custom_call.1} parent=11 // pred_fallthru
          _
        // Predicated region
        $region45: #{tpu_custom_call.1} parent=11 // pred_check
          %p375 = pneg %p238
        $region46: #{tpu_custom_call.1} parent=11 // pred_check_branch
          %377 = sbr.rel (%p375) target = $region48
        $region47: #{tpu_custom_call.1} parent=11 // pred_region
          _
        $region48: #{tpu_custom_call.1} parent=11 // pred_fallthru
          _
        // Predicated region
        $region49: #{tpu_custom_call.1} parent=11 // pred_check
          %p378 = pneg %p259
        $region50: #{tpu_custom_call.1} parent=11 // pred_check_branch
          %380 = sbr.rel (%p378) target = $region52
        $region51: #{tpu_custom_call.1} parent=11 // pred_region
          _
        $region52: #{tpu_custom_call.1} parent=11 // pred_fallthru
          _
        // Predicated region
        $region53: #{tpu_custom_call.1} parent=11 // pred_check
          %p381 = pneg %p280
        $region54: #{tpu_custom_call.1} parent=11 // pred_check_branch
          %383 = sbr.rel (%p381) target = $region56
        $region55: #{tpu_custom_call.1} parent=11 // pred_region
          _
        $region56: #{tpu_custom_call.1} parent=11 // pred_fallthru
          _
      $region12: #{tpu_custom_call.1} parent=5 // pred_fallthru
        _
      %p384 = scmp.lt.s32.totalorder %s23, 2
      // Predicated region
      $region57: #{tpu_custom_call.1} parent=5 // pred_check
        %p385 = pneg %p384
      $region58: #{tpu_custom_call.1} parent=5 // pred_check_branch
        %387 = sbr.rel (%p385) target = $region60
      $region59: #{tpu_custom_call.1} parent=5 // pred_region
        // Predicated region
        $region61: #{tpu_custom_call.1} parent=59 // pred_check
          %p388 = pneg %p43
        $region62: #{tpu_custom_call.1} parent=59 // pred_check_branch
          %390 = sbr.rel (%p388) target = $region64
        $region63: #{tpu_custom_call.1} parent=59 // pred_region
          %p391 = scmp.lt.s32.totalorder %s23, 1
          %s392 = scalar_select %p391, %s23, 1
          %s393 = smul.addr %s392, 8
          %s394 = smul.addr %s393, 8
          %s395 = scalar_lea.vmem %s0, %s394
        $region64: #{tpu_custom_call.1} parent=59 // pred_fallthru
          _
      $region60: #{tpu_custom_call.1} parent=5 // pred_fallthru
        _
      %p396 = scmp.le.s32.totalorder 1, %s23
      %p397 = scmp.lt.s32.totalorder %s23, 3
      %p398 = pnand %p396, %p397
      %p399 = pneg %p398
      // Predicated region
      $region65: #{tpu_custom_call.1} parent=5 // pred_check
        _
      $region66: #{tpu_custom_call.1} parent=5 // pred_check_branch
        %401 = sbr.rel (%p398) target = $region68
      $region67: #{tpu_custom_call.1} parent=5 // pred_region
        %s402 = ssub.s32 %s23, 1
        // Predicated region
        $region69: #{tpu_custom_call.1} parent=67 // pred_check
          %p403 = pneg %p133
        $region70: #{tpu_custom_call.1} parent=67 // pred_check_branch
          %405 = sbr.rel (%p403) target = $region72
        $region71: #{tpu_custom_call.1} parent=67 // pred_region
          %406 = dma.done [#allocation3], 256
        $region72: #{tpu_custom_call.1} parent=67 // pred_fallthru
          _
        // Predicated region
        $region73: #{tpu_custom_call.1} parent=67 // pred_check
          %p407 = pneg %p154
        $region74: #{tpu_custom_call.1} parent=67 // pred_check_branch
          %409 = sbr.rel (%p407) target = $region76
        $region75: #{tpu_custom_call.1} parent=67 // pred_region
          %410 = dma.done [#allocation6], 256
        $region76: #{tpu_custom_call.1} parent=67 // pred_fallthru
          _
        // Predicated region
        $region77: #{tpu_custom_call.1} parent=67 // pred_check
          %p411 = pneg %p175
        $region78: #{tpu_custom_call.1} parent=67 // pred_check_branch
          %413 = sbr.rel (%p411) target = $region80
        $region79: #{tpu_custom_call.1} parent=67 // pred_region
          %414 = dma.done [#allocation6], 256
        $region80: #{tpu_custom_call.1} parent=67 // pred_fallthru
          _
        %p415 = scmp.lt.s32.totalorder %s28, 1
        %s416 = scalar_select %p415, %s28, 1
        %s417 = smul.addr %s416, 8
        %s418 = smul.addr %s417, 8
        %s419 = scalar_lea.vmem %s0, %s418
        %p420 = pneg %p49
        %p421 = pneg %p46
        %p422 = pneg %p70
        %p423 = pneg %p67
        %p424 = pneg %p91
        %p425 = pneg %p88
        %p426 = pneg %p112
        %p427 = pneg %p109
        %p428 = pneg %p133
        %p429 = pneg %p130
        %p430 = pneg %p154
        %p431 = pneg %p151
        %p432 = pneg %p175
        %p433 = pneg %p172
        %p434 = pneg %p196
        %p435 = pneg %p193
        %p436 = pneg %p217
        %p437 = pneg %p214
        %p438 = pneg %p238
        %p439 = pneg %p235
        %p440 = pneg %p259
        %p441 = pneg %p256
        %p442 = pneg %p280
        %p443 = pneg %p277
        %p444 = pneg %p306
        %p445 = pneg %p303
        %s446 = sand.u32 %s293, 1
        %s447 = scalar_lea.sflag [#allocation4], %s446
        %s448 = sand.u32 %s293, 1
        %s449 = smul.addr %s448, 64
        %s450 = scalar_lea.vmem [#allocation8], %s449
        %p451 = scmp.lt.s32.totalorder %s28, 1
        %s452 = scalar_select %p451, %s28, 1
        %s453 = smul.addr %s452, 8
        %s454 = smul.addr %s453, 8
        %s455 = scalar_lea.vmem %s0, %s454
        %v456 = vld [vmem:[%s455] sm:$0xff]
        %v457 = vld [vmem:[%s455 + $0x8] sm:$0xff]
        %v458 = vld [vmem:[%s455 + $0x10] sm:$0xff]
        %v459 = vld [vmem:[%s455 + $0x18] sm:$0xff]
        %v460 = vld [vmem:[%s455 + $0x20] sm:$0xff]
        %v461 = vld [vmem:[%s455 + $0x28] sm:$0xff]
        %v462 = vld [vmem:[%s455 + $0x30] sm:$0xff]
        %v463 = vld [vmem:[%s455 + $0x38] sm:$0xff]
        %vm464 = vcmask 130048
        %v465 = vsel %vm464, %v456, 0.0
        %v466 = vsel %vm464, %v458, 0.0
        %v467 = vadd.f32 %v465, %v466
        %v468 = vsel %vm464, %v460, 0.0
        %v469 = vadd.f32 %v467, %v468
        %v470 = vsel %vm464, %v462, 0.0
        %v471 = vadd.f32 %v469, %v470
        %v472 = vsel %vm464, %v457, 0.0
        %v473 = vsel %vm464, %v459, 0.0
        %v474 = vadd.f32 %v472, %v473
        %v475 = vsel %vm464, %v461, 0.0
        %v476 = vadd.f32 %v474, %v475
        %v477 = vsel %vm464, %v463, 0.0
        %v478 = vadd.f32 %v476, %v477
        %v479 = vrcp.pop 4.0
        %v480 = vmul.f32 %v471, %v479
        %v481 = vmul.f32 %v478, %v479
        %v482 = vsub.f32 %v456, %v480
        %v483 = vsub.f32 %v457, %v481
        %v484 = vsub.f32 %v458, %v480
        %v485 = vsub.f32 %v459, %v481
        %v486 = vsub.f32 %v460, %v480
        %v487 = vsub.f32 %v461, %v481
        %v488 = vsub.f32 %v462, %v480
        %v489 = vsub.f32 %v463, %v481
        %v490 = vmul.f32 %v482, %v482
        %v491 = vmul.f32 %v483, %v483
        %v492 = vmul.f32 %v484, %v484
        %v493 = vmul.f32 %v485, %v485
        %v494 = vmul.f32 %v486, %v486
        %v495 = vmul.f32 %v487, %v487
        %v496 = vmul.f32 %v488, %v488
        %v497 = vmul.f32 %v489, %v489
        %v498 = vsel %vm464, %v490, 0.0
        %v499 = vsel %vm464, %v492, 0.0
        %v500 = vadd.f32 %v498, %v499
        %v501 = vsel %vm464, %v494, 0.0
        %v502 = vadd.f32 %v500, %v501
        %v503 = vsel %vm464, %v496, 0.0
        %v504 = vadd.f32 %v502, %v503
        %v505 = vsel %vm464, %v491, 0.0
        %v506 = vsel %vm464, %v493, 0.0
        %v507 = vadd.f32 %v505, %v506
        %v508 = vsel %vm464, %v495, 0.0
        %v509 = vadd.f32 %v507, %v508
        %v510 = vsel %vm464, %v497, 0.0
        %v511 = vadd.f32 %v509, %v510
        %v512 = vmul.f32 %v504, %v479
        %v513 = vmul.f32 %v511, %v479
        %v514 = vadd.f32 %v512, 1e-06
        %v515 = vadd.f32 %v513, 1e-06
        %v516 = vrsqrt.pop %v514
        %v517 = vrsqrt.pop %v515
        %v518 = vmul.f32 %v482, %v516
        %v519 = vmul.f32 %v483, %v517
        %v520 = vmul.f32 %v484, %v516
        %v521 = vmul.f32 %v485, %v517
        %v522 = vmul.f32 %v486, %v516
        %v523 = vmul.f32 %v487, %v517
        %v524 = vmul.f32 %v488, %v516
        %v525 = vmul.f32 %v489, %v517
        %v526 = vld [vmem:[%s1] sm:$0x1]
        %v527 = vld [vmem:[%s1 + $0x1] sm:$0x1]
        %v528 = vld [vmem:[%s1 + $0x2] sm:$0x1]
        %v529 = vld [vmem:[%s1 + $0x3] sm:$0x1]
        %v534 = vlaneseq
        %v535 = vshrl.u32 %v534, 7
        %v536 = vsub.s32 0, %v535
        %v537 = vrot.slane %v526, %v536
        %v538 = vlaneseq
        %v539 = vshrl.u32 %v538, 7
        %v540 = vsub.s32 0, %v539
        %v541 = vrot.slane %v527, %v540
        %v542 = vlaneseq
        %v543 = vshrl.u32 %v542, 7
        %v544 = vsub.s32 0, %v543
        %v545 = vrot.slane %v528, %v544
        %v546 = vlaneseq
        %v547 = vshrl.u32 %v546, 7
        %v548 = vsub.s32 0, %v547
        %v549 = vrot.slane %v529, %v548
        %550 = vset.pattern.permute.xlu0 0
        %551 = vperm.xlu0 %550, %v537
        %v552 = vpop.permute.xlu0 %551
        %554 = vset.pattern.permute.xlu0 0
        %555 = vperm.xlu0 %554, %v541
        %v556 = vpop.permute.xlu0 %555
        %558 = vset.pattern.permute.xlu0 0
        %559 = vperm.xlu0 %558, %v545
        %v560 = vpop.permute.xlu0 %559
        %562 = vset.pattern.permute.xlu0 0
        %563 = vperm.xlu0 %562, %v549
        %v564 = vpop.permute.xlu0 %563
        %v566 = vmul.f32 %v552, %v518
        %v567 = vmul.f32 %v552, %v519
        %v568 = vmul.f32 %v556, %v520
        %v569 = vmul.f32 %v556, %v521
        %v570 = vmul.f32 %v560, %v522
        %v571 = vmul.f32 %v560, %v523
        %v572 = vmul.f32 %v564, %v524
        %v573 = vmul.f32 %v564, %v525
        %v574 = vld [vmem:[%s2] sm:$0x1]
        %v575 = vld [vmem:[%s2 + $0x1] sm:$0x1]
        %v576 = vld [vmem:[%s2 + $0x2] sm:$0x1]
        %v577 = vld [vmem:[%s2 + $0x3] sm:$0x1]
        %v582 = vlaneseq
        %v583 = vshrl.u32 %v582, 7
        %v584 = vsub.s32 0, %v583
        %v585 = vrot.slane %v574, %v584
        %v586 = vlaneseq
        %v587 = vshrl.u32 %v586, 7
        %v588 = vsub.s32 0, %v587
        %v589 = vrot.slane %v575, %v588
        %v590 = vlaneseq
        %v591 = vshrl.u32 %v590, 7
        %v592 = vsub.s32 0, %v591
        %v593 = vrot.slane %v576, %v592
        %v594 = vlaneseq
        %v595 = vshrl.u32 %v594, 7
        %v596 = vsub.s32 0, %v595
        %v597 = vrot.slane %v577, %v596
        %598 = vset.pattern.permute.xlu0 0
        %599 = vperm.xlu0 %598, %v585
        %v600 = vpop.permute.xlu0 %599
        %602 = vset.pattern.permute.xlu0 0
        %603 = vperm.xlu0 %602, %v589
        %v604 = vpop.permute.xlu0 %603
        %606 = vset.pattern.permute.xlu0 0
        %607 = vperm.xlu0 %606, %v593
        %v608 = vpop.permute.xlu0 %607
        %610 = vset.pattern.permute.xlu0 0
        %611 = vperm.xlu0 %610, %v597
        %v612 = vpop.permute.xlu0 %611
        %v614 = vadd.f32 %v566, %v600
        %v615 = vadd.f32 %v567, %v600
        %v616 = vadd.f32 %v568, %v604
        %v617 = vadd.f32 %v569, %v604
        %v618 = vadd.f32 %v570, %v608
        %v619 = vadd.f32 %v571, %v608
        %v620 = vadd.f32 %v572, %v612
        %v621 = vadd.f32 %v573, %v612
        %v622 = vld [vmem:[#allocation7] sm:$0xff]
        %v623 = vld [vmem:[#allocation7 + $0x8] sm:$0xff]
        %v625 = vsel %vm464, %v618, 0
        %v628 = vsel %vm464, %v619, 0
        %v631 = vsel %vm464, %v620, 0
        %v634 = vsel %vm464, %v621, 0
        %636 = vmatprep.subr.mxu0 0.0
        %637 = vmatpush1.msra.mxu0 0.0
        %638 = vmatprep.subr.mxu0 0.0
        %639 = vmatpush1.msra.mxu0 0.0
        %640 = vmatprep.subr.mxu0 0.0
        %641 = vmatpush1.msra.mxu0 0.0
        %642 = vmatprep.subr.mxu0 0.0
        %643 = vmatpush1.msra.mxu0 0.0
        %644 = vmatprep.subr.mxu0 0.0
        %645 = vmatpush1.msra.mxu0 0.0
        %646 = vmatprep.subr.mxu0 0.0
        %647 = vmatpush1.msra.mxu0 0.0
        %648 = vmatprep.subr.mxu0 0.0
        %649 = vmatpush1.msra.mxu0 0.0
        %650 = vmatprep.subr.mxu0 0.0
        %651 = vmatpush1.msra.mxu0 0.0
        %652 = vmatprep.subr.mxu0 0.0
        %653 = vmatpush1.msra.mxu0 0.0
        %654 = vmatprep.subr.mxu0 0.0
        %655 = vmatpush1.msra.mxu0 0.0
        %656 = vmatprep.subr.mxu0 0.0
        %657 = vmatpush1.msra.mxu0 0.0
        %658 = vmatprep.subr.mxu0 0.0
        %659 = vmatpush1.msra.mxu0 0.0
        %660 = vmatprep.subr.mxu0 0.0
        %661 = vmatpush1.msra.mxu0 0.0
        %662 = vmatprep.subr.mxu0 0.0
        %663 = vmatpush1.msra.mxu0 0.0
        %664 = vmatprep.subr.mxu0 0.0
        %665 = vmatpush1.msra.mxu0 %v623
        %666 = vmatprep.subr.mxu0 0.0
        %667 = vmatpush1.msra.mxu0 %v622
        %668 = vmatprep.subr.mxu0 0.0
        %669 = vmatpush2.msra.mxu0 0.0
        %670 = vmatprep.subr.mxu0 0.0
        %671 = vmatpush2.msra.mxu0 0.0
        %672 = vmatprep.subr.mxu0 0.0
        %673 = vmatpush2.msra.mxu0 0.0
        %674 = vmatprep.subr.mxu0 0.0
        %675 = vmatpush2.msra.mxu0 0.0
        %676 = vmatprep.subr.mxu0 0.0
        %677 = vmatpush2.msra.mxu0 0.0
        %678 = vmatprep.subr.mxu0 0.0
        %679 = vmatpush2.msra.mxu0 0.0
        %680 = vmatprep.subr.mxu0 0.0
        %681 = vmatpush2.msra.mxu0 0.0
        %682 = vmatprep.subr.mxu0 0.0
        %683 = vmatpush2.msra.mxu0 0.0
        %684 = vmatprep.subr.mxu0 0.0
        %685 = vmatpush2.msra.mxu0 0.0
        %686 = vmatprep.subr.mxu0 0.0
        %687 = vmatpush2.msra.mxu0 0.0
        %688 = vmatprep.subr.mxu0 0.0
        %689 = vmatpush2.msra.mxu0 0.0
        %690 = vmatprep.subr.mxu0 0.0
        %691 = vmatpush2.msra.mxu0 0.0
        %692 = vmatprep.subr.mxu0 0.0
        %693 = vmatpush2.msra.mxu0 0.0
        %694 = vmatprep.subr.mxu0 0.0
        %695 = vmatpush2.msra.mxu0 0.0
        %696 = vmatprep.subr.mxu0 0.0
        %697 = vmatpush2.msra.mxu0 0.0
        %698 = vmatprep.subr.mxu0 0.0
        %699 = vmatpush2.msra.mxu0 0.0
        %700 = vmatprep.mubr.f32.mxu0 0.0
        %701 = vmatmul.mubr.f32.gmra.mxu0 %v625
        %v702 = vpop.f32.mrf.mxu0
        %v703 = vadd.f32 0.0, %v702
        %v704 = vpop.f32.mrf.mxu0
        %705 = vmatprep.mubr.f32.mxu0 0.0
        %706 = vmatmul.mubr.f32.gmra.mxu0 %v628
        %v707 = vpop.f32.mrf.mxu0
        %v708 = vadd.f32 0.0, %v707
        %v709 = vpop.f32.mrf.mxu0
        %710 = vmatprep.mubr.f32.mxu0 0.0
        %711 = vmatmul.mubr.f32.gmra.mxu0 %v631
        %v712 = vpop.f32.mrf.mxu0
        %v713 = vadd.f32 0.0, %v712
        %v714 = vpop.f32.mrf.mxu0
        %715 = vmatprep.mubr.f32.mxu0 0.0
        %716 = vmatmul.mubr.f32.gmra.mxu0 %v634
        %v717 = vpop.f32.mrf.mxu0
        %v718 = vadd.f32 0.0, %v717
        %v719 = vpop.f32.mrf.mxu0
        %720 = vdwg.mxu0
        %723 = vrot.lane.b32.xlu0 %v713, 9
        %v724 = vpop.permute.xlu0 %723
        %725 = vrot.lane.b32.xlu0 %v718, 9
        %v726 = vpop.permute.xlu0 %725
        %731 = vrot.lane.b32.xlu0 %v703, 9
        %v732 = vpop.permute.xlu0 %731
        %733 = vrot.lane.b32.xlu0 %v708, 9
        %v734 = vpop.permute.xlu0 %733
        %737 = vrot.lane.b32.xlu0 %v713, 18
        %v738 = vpop.permute.xlu0 %737
        %739 = vrot.lane.b32.xlu0 %v718, 18
        %v740 = vpop.permute.xlu0 %739
        %vm743 = vcmask 72704
        %v744 = vsel %vm743, %v703, %v724
        %v745 = vsel %vm743, %v708, %v726
        %vm746 = vcmask 146432
        %v747 = vsel %vm746, %v744, %v732
        %v748 = vsel %vm746, %v745, %v734
        %vm749 = vcmask 220160
        %v750 = vsel %vm749, %v747, %v738
        %v751 = vsel %vm749, %v748, %v740
        %v752 = vld [vmem:[%s7] sm:$0xff]
        %v753 = vld [vmem:[%s7 + $0x8] sm:$0xff]
        %v754 = vld [vmem:[%s7 + $0x10] sm:$0xff]
        %v755 = vld [vmem:[%s7 + $0x18] sm:$0xff]
        %v757 = vsel %vm464, %v752, 0
        %v760 = vsel %vm464, %v753, 0
        %v763 = vsel %vm464, %v754, 0
        %v766 = vsel %vm464, %v755, 0
        %768 = vmatprep.subr.mxu0 0.0
        %769 = vmatpush1.msra.mxu0 0.0
        %770 = vmatprep.subr.mxu0 0.0
        %771 = vmatpush1.msra.mxu0 0.0
        %772 = vmatprep.subr.mxu0 0.0
        %773 = vmatpush1.msra.mxu0 0.0
        %774 = vmatprep.subr.mxu0 0.0
        %775 = vmatpush1.msra.mxu0 0.0
        %776 = vmatprep.subr.mxu0 0.0
        %777 = vmatpush1.msra.mxu0 0.0
        %778 = vmatprep.subr.mxu0 0.0
        %779 = vmatpush1.msra.mxu0 0.0
        %780 = vmatprep.subr.mxu0 0.0
        %781 = vmatpush1.msra.mxu0 0.0
        %782 = vmatprep.subr.mxu0 0.0
        %783 = vmatpush1.msra.mxu0 0.0
        %784 = vmatprep.subr.mxu0 0.0
        %785 = vmatpush1.msra.mxu0 0.0
        %786 = vmatprep.subr.mxu0 0.0
        %787 = vmatpush1.msra.mxu0 0.0
        %788 = vmatprep.subr.mxu0 0.0
        %789 = vmatpush1.msra.mxu0 0.0
        %790 = vmatprep.subr.mxu0 0.0
        %791 = vmatpush1.msra.mxu0 0.0
        %792 = vmatprep.subr.mxu0 0.0
        %793 = vmatpush1.msra.mxu0 0.0
        %794 = vmatprep.subr.mxu0 0.0
        %795 = vmatpush1.msra.mxu0 0.0
        %796 = vmatprep.subr.mxu0 0.0
        %797 = vmatpush1.msra.mxu0 %v751
        %798 = vmatprep.subr.mxu0 0.0
        %799 = vmatpush1.msra.mxu0 %v750
        %800 = vmatprep.subr.mxu0 0.0
        %801 = vmatpush2.msra.mxu0 0.0
        %802 = vmatprep.subr.mxu0 0.0
        %803 = vmatpush2.msra.mxu0 0.0
        %804 = vmatprep.subr.mxu0 0.0
        %805 = vmatpush2.msra.mxu0 0.0
        %806 = vmatprep.subr.mxu0 0.0
        %807 = vmatpush2.msra.mxu0 0.0
        %808 = vmatprep.subr.mxu0 0.0
        %809 = vmatpush2.msra.mxu0 0.0
        %810 = vmatprep.subr.mxu0 0.0
        %811 = vmatpush2.msra.mxu0 0.0
        %812 = vmatprep.subr.mxu0 0.0
        %813 = vmatpush2.msra.mxu0 0.0
        %814 = vmatprep.subr.mxu0 0.0
        %815 = vmatpush2.msra.mxu0 0.0
        %816 = vmatprep.subr.mxu0 0.0
        %817 = vmatpush2.msra.mxu0 0.0
        %818 = vmatprep.subr.mxu0 0.0
        %819 = vmatpush2.msra.mxu0 0.0
        %820 = vmatprep.subr.mxu0 0.0
        %821 = vmatpush2.msra.mxu0 0.0
        %822 = vmatprep.subr.mxu0 0.0
        %823 = vmatpush2.msra.mxu0 0.0
        %824 = vmatprep.subr.mxu0 0.0
        %825 = vmatpush2.msra.mxu0 0.0
        %826 = vmatprep.subr.mxu0 0.0
        %827 = vmatpush2.msra.mxu0 0.0
        %828 = vmatprep.subr.mxu0 0.0
        %829 = vmatpush2.msra.mxu0 0.0
        %830 = vmatprep.subr.mxu0 0.0
        %831 = vmatpush2.msra.mxu0 0.0
        %832 = vmatprep.mubr.f32.mxu0 0.0
        %833 = vmatmul.mubr.f32.gmra.mxu0 %v757
        %v834 = vpop.f32.mrf.mxu0
        %v835 = vadd.f32 0.0, %v834
        %v836 = vpop.f32.mrf.mxu0
        %837 = vmatprep.mubr.f32.mxu0 0.0
        %838 = vmatmul.mubr.f32.gmra.mxu0 %v760
        %v839 = vpop.f32.mrf.mxu0
        %v840 = vadd.f32 0.0, %v839
        %v841 = vpop.f32.mrf.mxu0
        %842 = vmatprep.mubr.f32.mxu0 0.0
        %843 = vmatmul.mubr.f32.gmra.mxu0 %v763
        %v844 = vpop.f32.mrf.mxu0
        %v845 = vadd.f32 0.0, %v844
        %v846 = vpop.f32.mrf.mxu0
        %847 = vmatprep.mubr.f32.mxu0 0.0
        %848 = vmatmul.mubr.f32.gmra.mxu0 %v766
        %v849 = vpop.f32.mrf.mxu0
        %v850 = vadd.f32 0.0, %v849
        %v851 = vpop.f32.mrf.mxu0
        %852 = vdwg.mxu0
        %855 = vrot.lane.b32.xlu0 %v845, 110
        %v856 = vpop.permute.xlu0 %855
        %857 = vrot.lane.b32.xlu0 %v850, 110
        %v858 = vpop.permute.xlu0 %857
        %v861 = vsub.f32 %v835, %v856
        %v862 = vsub.f32 %v840, %v858
        %863 = vrot.lane.b32.xlu0 %v845, 18
        %v864 = vpop.permute.xlu0 %863
        %865 = vrot.lane.b32.xlu0 %v850, 18
        %v866 = vpop.permute.xlu0 %865
        %v869 = vadd.f32 %v835, %v864
        %v870 = vadd.f32 %v840, %v866
        %v871 = vld [vmem:[#allocation2] sm:$0xff]
        %v872 = vld [vmem:[#allocation2 + $0x8] sm:$0xff]
        %v873 = vld [vmem:[#allocation5] sm:$0xff]
        %v874 = vld [vmem:[#allocation5 + $0x8] sm:$0xff]
        %v875 = vmul.f32 %v861, %v871
        %v876 = vmul.f32 %v862, %v872
        %879 = vrot.lane.b32.xlu0 %v873, 18
        %v880 = vpop.permute.xlu0 %879
        %881 = vrot.lane.b32.xlu0 %v874, 18
        %v882 = vpop.permute.xlu0 %881
        %v885 = vmul.f32 %v869, %v880
        %v886 = vmul.f32 %v870, %v882
        %889 = vrot.lane.b32.xlu0 %v885, 110
        %v890 = vpop.permute.xlu0 %889
        %891 = vrot.lane.b32.xlu0 %v886, 110
        %v892 = vpop.permute.xlu0 %891
        %v895 = vsub.f32 %v875, %v890
        %v896 = vsub.f32 %v876, %v892
        %v897 = vmul.f32 %v861, %v873
        %v898 = vmul.f32 %v862, %v874
        %901 = vrot.lane.b32.xlu0 %v871, 18
        %v902 = vpop.permute.xlu0 %901
        %903 = vrot.lane.b32.xlu0 %v872, 18
        %v904 = vpop.permute.xlu0 %903
        %v907 = vmul.f32 %v869, %v902
        %v908 = vmul.f32 %v870, %v904
        %911 = vrot.lane.b32.xlu0 %v907, 110
        %v912 = vpop.permute.xlu0 %911
        %913 = vrot.lane.b32.xlu0 %v908, 110
        %v914 = vpop.permute.xlu0 %913
        %v917 = vadd.f32 %v897, %v912
        %v918 = vadd.f32 %v898, %v914
        %v919 = vld [vmem:[%s8] sm:$0xff]
        %v920 = vld [vmem:[%s8 + $0x8] sm:$0xff]
        %v921 = vld [vmem:[%s8 + $0x10] sm:$0xff]
        %v922 = vld [vmem:[%s8 + $0x18] sm:$0xff]
        %925 = vrot.lane.b32.xlu0 %v917, 18
        %v926 = vpop.permute.xlu0 %925
        %927 = vrot.lane.b32.xlu0 %v918, 18
        %v928 = vpop.permute.xlu0 %927
        %v931 = vsel %vm746, %v895, %v926
        %v932 = vsel %vm746, %v896, %v928
        %v934 = vsel %vm464, %v919, 0
        %v937 = vsel %vm464, %v920, 0
        %v940 = vsel %vm464, %v921, 0
        %v943 = vsel %vm464, %v922, 0
        %945 = vmatprep.subr.mxu0 0.0
        %946 = vmatpush1.msra.mxu0 0.0
        %947 = vmatprep.subr.mxu0 0.0
        %948 = vmatpush1.msra.mxu0 0.0
        %949 = vmatprep.subr.mxu0 0.0
        %950 = vmatpush1.msra.mxu0 0.0
        %951 = vmatprep.subr.mxu0 0.0
        %952 = vmatpush1.msra.mxu0 0.0
        %953 = vmatprep.subr.mxu0 0.0
        %954 = vmatpush1.msra.mxu0 0.0
        %955 = vmatprep.subr.mxu0 0.0
        %956 = vmatpush1.msra.mxu0 0.0
        %957 = vmatprep.subr.mxu0 0.0
        %958 = vmatpush1.msra.mxu0 0.0
        %959 = vmatprep.subr.mxu0 0.0
        %960 = vmatpush1.msra.mxu0 0.0
        %961 = vmatprep.subr.mxu0 0.0
        %962 = vmatpush1.msra.mxu0 0.0
        %963 = vmatprep.subr.mxu0 0.0
        %964 = vmatpush1.msra.mxu0 0.0
        %965 = vmatprep.subr.mxu0 0.0
        %966 = vmatpush1.msra.mxu0 0.0
        %967 = vmatprep.subr.mxu0 0.0
        %968 = vmatpush1.msra.mxu0 0.0
        %969 = vmatprep.subr.mxu0 0.0
        %970 = vmatpush1.msra.mxu0 0.0
        %971 = vmatprep.subr.mxu0 0.0
        %972 = vmatpush1.msra.mxu0 0.0
        %973 = vmatprep.subr.mxu0 0.0
        %974 = vmatpush1.msra.mxu0 %v932
        %975 = vmatprep.subr.mxu0 0.0
        %976 = vmatpush1.msra.mxu0 %v931
        %977 = vmatprep.subr.mxu0 0.0
        %978 = vmatpush2.msra.mxu0 0.0
        %979 = vmatprep.subr.mxu0 0.0
        %980 = vmatpush2.msra.mxu0 0.0
        %981 = vmatprep.subr.mxu0 0.0
        %982 = vmatpush2.msra.mxu0 0.0
        %983 = vmatprep.subr.mxu0 0.0
        %984 = vmatpush2.msra.mxu0 0.0
        %985 = vmatprep.subr.mxu0 0.0
        %986 = vmatpush2.msra.mxu0 0.0
        %987 = vmatprep.subr.mxu0 0.0
        %988 = vmatpush2.msra.mxu0 0.0
        %989 = vmatprep.subr.mxu0 0.0
        %990 = vmatpush2.msra.mxu0 0.0
        %991 = vmatprep.subr.mxu0 0.0
        %992 = vmatpush2.msra.mxu0 0.0
        %993 = vmatprep.subr.mxu0 0.0
        %994 = vmatpush2.msra.mxu0 0.0
        %995 = vmatprep.subr.mxu0 0.0
        %996 = vmatpush2.msra.mxu0 0.0
        %997 = vmatprep.subr.mxu0 0.0
        %998 = vmatpush2.msra.mxu0 0.0
        %999 = vmatprep.subr.mxu0 0.0
        %1000 = vmatpush2.msra.mxu0 0.0
        %1001 = vmatprep.subr.mxu0 0.0
        %1002 = vmatpush2.msra.mxu0 0.0
        %1003 = vmatprep.subr.mxu0 0.0
        %1004 = vmatpush2.msra.mxu0 0.0
        %1005 = vmatprep.subr.mxu0 0.0
        %1006 = vmatpush2.msra.mxu0 0.0
        %1007 = vmatprep.subr.mxu0 0.0
        %1008 = vmatpush2.msra.mxu0 0.0
        %1009 = vmatprep.mubr.f32.mxu0 0.0
        %1010 = vmatmul.mubr.f32.gmra.mxu0 %v934
        %v1011 = vpop.f32.mrf.mxu0
        %v1012 = vadd.f32 0.0, %v1011
        %v1013 = vpop.f32.mrf.mxu0
        %1014 = vmatprep.mubr.f32.mxu0 0.0
        %1015 = vmatmul.mubr.f32.gmra.mxu0 %v937
        %v1016 = vpop.f32.mrf.mxu0
        %v1017 = vadd.f32 0.0, %v1016
        %v1018 = vpop.f32.mrf.mxu0
        %1019 = vmatprep.mubr.f32.mxu0 0.0
        %1020 = vmatmul.mubr.f32.gmra.mxu0 %v940
        %v1021 = vpop.f32.mrf.mxu0
        %v1022 = vadd.f32 0.0, %v1021
        %v1023 = vpop.f32.mrf.mxu0
        %1024 = vmatprep.mubr.f32.mxu0 0.0
        %1025 = vmatmul.mubr.f32.gmra.mxu0 %v943
        %v1026 = vpop.f32.mrf.mxu0
        %v1027 = vadd.f32 0.0, %v1026
        %v1028 = vpop.f32.mrf.mxu0
        %1029 = vdwg.mxu0
        %1032 = vrot.lane.b32.xlu0 %v1022, 110
        %v1033 = vpop.permute.xlu0 %1032
        %1034 = vrot.lane.b32.xlu0 %v1027, 110
        %v1035 = vpop.permute.xlu0 %1034
        %v1038 = vsub.f32 %v1012, %v1033
        %v1039 = vsub.f32 %v1017, %v1035
        %1040 = vrot.lane.b32.xlu0 %v1022, 18
        %v1041 = vpop.permute.xlu0 %1040
        %1042 = vrot.lane.b32.xlu0 %v1027, 18
        %v1043 = vpop.permute.xlu0 %1042
        %v1046 = vadd.f32 %v1012, %v1041
        %v1047 = vadd.f32 %v1017, %v1043
        %1050 = vrot.lane.b32.xlu0 %v1038, 119
        %v1051 = vpop.permute.xlu0 %1050
        %1052 = vrot.lane.b32.xlu0 %v1039, 119
        %v1053 = vpop.permute.xlu0 %1052
        %1058 = vrot.lane.b32.xlu0 %v1046, 119
        %v1059 = vpop.permute.xlu0 %1058
        %1060 = vrot.lane.b32.xlu0 %v1047, 119
        %v1061 = vpop.permute.xlu0 %1060
        %1062 = vrot.lane.b32.xlu0 %v1059, 119
        %v1063 = vpop.permute.xlu0 %1062
        %1064 = vrot.lane.b32.xlu0 %v1061, 119
        %v1065 = vpop.permute.xlu0 %1064
        %v1070 = vsel %vm743, %v1038, %v1059
        %v1071 = vsel %vm743, %v1039, %v1061
        %v1072 = vsel %vm743, %v1051, %v1063
        %v1073 = vsel %vm743, %v1053, %v1065
        %v1074 = vld [vmem:[%s9] sm:$0xff]
        %v1075 = vld [vmem:[%s9 + $0x8] sm:$0xff]
        %v1076 = vld [vmem:[%s9 + $0x10] sm:$0x3]
        %v1078 = vsel %vm746, %v1070, 0
        %v1081 = vsel %vm746, %v1071, 0
        %v1084 = vsel %vm746, %v1072, 0
        %v1087 = vsel %vm746, %v1073, 0
        %vm1089 = vcmask 1041408
        %v1091 = vsel %vm1089, %v1076, 0
        %1093 = vmatprep.subr.mxu0 0.0
        %1094 = vmatpush1.msra.mxu0 0.0
        %1095 = vmatprep.subr.mxu0 0.0
        %1096 = vmatpush1.msra.mxu0 0.0
        %1097 = vmatprep.subr.mxu0 0.0
        %1098 = vmatpush1.msra.mxu0 0.0
        %1099 = vmatprep.subr.mxu0 0.0
        %1100 = vmatpush1.msra.mxu0 0.0
        %1101 = vmatprep.subr.mxu0 0.0
        %1102 = vmatpush1.msra.mxu0 0.0
        %1103 = vmatprep.subr.mxu0 0.0
        %1104 = vmatpush1.msra.mxu0 0.0
        %1105 = vmatprep.subr.mxu0 0.0
        %1106 = vmatpush1.msra.mxu0 0.0
        %1107 = vmatprep.subr.mxu0 0.0
        %1108 = vmatpush1.msra.mxu0 0.0
        %1109 = vmatprep.subr.mxu0 0.0
        %1110 = vmatpush1.msra.mxu0 0.0
        %1111 = vmatprep.subr.mxu0 0.0
        %1112 = vmatpush1.msra.mxu0 0.0
        %1113 = vmatprep.subr.mxu0 0.0
        %1114 = vmatpush1.msra.mxu0 0.0
        %1115 = vmatprep.subr.mxu0 0.0
        %1116 = vmatpush1.msra.mxu0 0.0
        %1117 = vmatprep.subr.mxu0 0.0
        %1118 = vmatpush1.msra.mxu0 0.0
        %1119 = vmatprep.subr.mxu0 0.0
        %1120 = vmatpush1.msra.mxu0 %v1091
        %1121 = vmatprep.subr.mxu0 0.0
        %1122 = vmatpush1.msra.mxu0 %v1075
        %1123 = vmatprep.subr.mxu0 0.0
        %1124 = vmatpush1.msra.mxu0 %v1074
        %1125 = vmatprep.subr.mxu0 0.0
        %1126 = vmatpush2.msra.mxu0 0.0
        %1127 = vmatprep.subr.mxu0 0.0
        %1128 = vmatpush2.msra.mxu0 0.0
        %1129 = vmatprep.subr.mxu0 0.0
        %1130 = vmatpush2.msra.mxu0 0.0
        %1131 = vmatprep.subr.mxu0 0.0
        %1132 = vmatpush2.msra.mxu0 0.0
        %1133 = vmatprep.subr.mxu0 0.0
        %1134 = vmatpush2.msra.mxu0 0.0
        %1135 = vmatprep.subr.mxu0 0.0
        %1136 = vmatpush2.msra.mxu0 0.0
        %1137 = vmatprep.subr.mxu0 0.0
        %1138 = vmatpush2.msra.mxu0 0.0
        %1139 = vmatprep.subr.mxu0 0.0
        %1140 = vmatpush2.msra.mxu0 0.0
        %1141 = vmatprep.subr.mxu0 0.0
        %1142 = vmatpush2.msra.mxu0 0.0
        %1143 = vmatprep.subr.mxu0 0.0
        %1144 = vmatpush2.msra.mxu0 0.0
        %1145 = vmatprep.subr.mxu0 0.0
        %1146 = vmatpush2.msra.mxu0 0.0
        %1147 = vmatprep.subr.mxu0 0.0
        %1148 = vmatpush2.msra.mxu0 0.0
        %1149 = vmatprep.subr.mxu0 0.0
        %1150 = vmatpush2.msra.mxu0 0.0
        %1151 = vmatprep.subr.mxu0 0.0
        %1152 = vmatpush2.msra.mxu0 0.0
        %1153 = vmatprep.subr.mxu0 0.0
        %1154 = vmatpush2.msra.mxu0 0.0
        %1155 = vmatprep.subr.mxu0 0.0
        %1156 = vmatpush2.msra.mxu0 0.0
        %1157 = vmatprep.mubr.f32.mxu0 0.0
        %1158 = vmatmul.mubr.f32.gmra.mxu0 %v1078
        %v1159 = vpop.f32.mrf.mxu0
        %v1160 = vadd.f32 0.0, %v1159
        %v1161 = vpop.f32.mrf.mxu0
        %1162 = vmatprep.mubr.f32.mxu0 0.0
        %1163 = vmatmul.mubr.f32.gmra.mxu0 %v1081
        %v1164 = vpop.f32.mrf.mxu0
        %v1165 = vadd.f32 0.0, %v1164
        %v1166 = vpop.f32.mrf.mxu0
        %1167 = vmatprep.mubr.f32.mxu0 0.0
        %1168 = vmatmul.mubr.f32.gmra.mxu0 %v1084
        %v1169 = vpop.f32.mrf.mxu0
        %v1170 = vadd.f32 0.0, %v1169
        %v1171 = vpop.f32.mrf.mxu0
        %1172 = vmatprep.mubr.f32.mxu0 0.0
        %1173 = vmatmul.mubr.f32.gmra.mxu0 %v1087
        %v1174 = vpop.f32.mrf.mxu0
        %v1175 = vadd.f32 0.0, %v1174
        %v1176 = vpop.f32.mrf.mxu0
        %1177 = vdwg.mxu0
        %vm1182 = vcmask 1040384
        %v1183 = vrot.slane %v614, 7
        %v1184 = vrot.slane %v615, 7
        %v1185 = vsel %vm1182, %v1183, %v1184
        %v1186 = vrot.slane %v616, 7
        %v1187 = vrot.slane %v617, 7
        %v1188 = vsel %vm1182, %v1186, %v1187
        %v1193 = vsel %vm1182, 0.0, %v1183
        %v1194 = vsel %vm1182, 0.0, %v1186
        %v1195 = vsel %vm1182, %v1184, 0.0
        %v1196 = vsel %vm1182, %v1187, 0.0
        %1201 = vrot.lane.b32.xlu0 %v1193, 1
        %v1202 = vpop.permute.xlu0 %1201
        %1203 = vrot.lane.b32.xlu0 %v1185, 1
        %v1204 = vpop.permute.xlu0 %1203
        %1205 = vrot.lane.b32.xlu0 %v1195, 1
        %v1206 = vpop.permute.xlu0 %1205
        %1207 = vrot.lane.b32.xlu0 %v1194, 1
        %v1208 = vpop.permute.xlu0 %1207
        %1209 = vrot.lane.b32.xlu0 %v1188, 1
        %v1210 = vpop.permute.xlu0 %1209
        %1211 = vrot.lane.b32.xlu0 %v1196, 1
        %v1212 = vpop.permute.xlu0 %1211
        %vm1219 = vcmask 7168
        %v1220 = vsel %vm1219, 0.0, %v1202
        %v1221 = vsel %vm1219, 0.0, %v1204
        %v1222 = vsel %vm1219, 0.0, %v1206
        %v1223 = vsel %vm1219, 0.0, %v1208
        %v1224 = vsel %vm1219, 0.0, %v1210
        %v1225 = vsel %vm1219, 0.0, %v1212
        %vm1226 = vcmask 138240
        %v1227 = vsel %vm1226, %v1220, 0.0
        %v1228 = vsel %vm1226, %v1221, 0.0
        %v1229 = vsel %vm1226, %v1222, 0.0
        %v1230 = vsel %vm1226, %v1223, 0.0
        %v1231 = vsel %vm1226, %v1224, 0.0
        %v1232 = vsel %vm1226, %v1225, 0.0
        %v1233 = vld [vmem:[%s3] sm:$0x1]
        %v1234 = vld [vmem:[%s3 + $0x1] sm:$0x1]
        %v1237 = vlaneseq
        %v1238 = vshrl.u32 %v1237, 7
        %v1239 = vsub.s32 0, %v1238
        %v1240 = vrot.slane %v1233, %v1239
        %v1241 = vlaneseq
        %v1242 = vshrl.u32 %v1241, 7
        %v1243 = vsub.s32 0, %v1242
        %v1244 = vrot.slane %v1234, %v1243
        %1245 = vset.pattern.permute.xlu0 0
        %1246 = vperm.xlu0 %1245, %v1240
        %v1247 = vpop.permute.xlu0 %1246
        %1249 = vset.pattern.permute.xlu0 0
        %1250 = vperm.xlu0 %1249, %v1244
        %v1251 = vpop.permute.xlu0 %1250
        %v1253 = vmul.f32 %v1247, %v1227
        %v1254 = vmul.f32 %v1247, %v1228
        %v1255 = vmul.f32 %v1251, %v1230
        %v1256 = vmul.f32 %v1251, %v1231
        %v1257 = vadd.f32 %v1253, 0.0
        %v1258 = vadd.f32 %v1254, 0.0
        %v1259 = vadd.f32 %v1255, 0.0
        %v1260 = vadd.f32 %v1256, 0.0
        %s1261 = scalar_lea.vmem %s3, 2
        %v1262 = vld [vmem:[%s1261] sm:$0x1]
        %v1263 = vld [vmem:[%s1261 + $0x1] sm:$0x1]
        %v1266 = vlaneseq
        %v1267 = vshrl.u32 %v1266, 7
        %v1268 = vsub.s32 0, %v1267
        %v1269 = vrot.slane %v1262, %v1268
        %v1270 = vlaneseq
        %v1271 = vshrl.u32 %v1270, 7
        %v1272 = vsub.s32 0, %v1271
        %v1273 = vrot.slane %v1263, %v1272
        %1274 = vset.pattern.permute.xlu0 0
        %1275 = vperm.xlu0 %1274, %v1269
        %v1276 = vpop.permute.xlu0 %1275
        %1278 = vset.pattern.permute.xlu0 0
        %1279 = vperm.xlu0 %1278, %v1273
        %v1280 = vpop.permute.xlu0 %1279
        %v1282 = vmul.f32 %v1276, %v1227
        %v1283 = vmul.f32 %v1276, %v1228
        %v1284 = vmul.f32 %v1280, %v1230
        %v1285 = vmul.f32 %v1280, %v1231
        %1290 = vrot.lane.b32.xlu0 %v1282, 127
        %v1291 = vpop.permute.xlu0 %1290
        %1292 = vrot.lane.b32.xlu0 %v1283, 127
        %v1293 = vpop.permute.xlu0 %1292
        %1294 = vrot.lane.b32.xlu0 %v1284, 127
        %v1295 = vpop.permute.xlu0 %1294
        %1296 = vrot.lane.b32.xlu0 %v1285, 127
        %v1297 = vpop.permute.xlu0 %1296
        %v1302 = vadd.f32 %v1257, %v1291
        %v1303 = vadd.f32 %v1258, %v1293
        %v1304 = vadd.f32 %v1259, %v1295
        %v1305 = vadd.f32 %v1260, %v1297
        %s1306 = scalar_lea.vmem %s3, 4
        %v1307 = vld [vmem:[%s1306] sm:$0x1]
        %v1308 = vld [vmem:[%s1306 + $0x1] sm:$0x1]
        %v1311 = vlaneseq
        %v1312 = vshrl.u32 %v1311, 7
        %v1313 = vsub.s32 0, %v1312
        %v1314 = vrot.slane %v1307, %v1313
        %v1315 = vlaneseq
        %v1316 = vshrl.u32 %v1315, 7
        %v1317 = vsub.s32 0, %v1316
        %v1318 = vrot.slane %v1308, %v1317
        %1319 = vset.pattern.permute.xlu0 0
        %1320 = vperm.xlu0 %1319, %v1314
        %v1321 = vpop.permute.xlu0 %1320
        %1323 = vset.pattern.permute.xlu0 0
        %1324 = vperm.xlu0 %1323, %v1318
        %v1325 = vpop.permute.xlu0 %1324
        %v1327 = vmul.f32 %v1321, %v1227
        %v1328 = vmul.f32 %v1321, %v1228
        %v1329 = vmul.f32 %v1325, %v1230
        %v1330 = vmul.f32 %v1325, %v1231
        %1335 = vrot.lane.b32.xlu0 %v1327, 126
        %v1336 = vpop.permute.xlu0 %1335
        %1337 = vrot.lane.b32.xlu0 %v1328, 126
        %v1338 = vpop.permute.xlu0 %1337
        %1339 = vrot.lane.b32.xlu0 %v1329, 126
        %v1340 = vpop.permute.xlu0 %1339
        %1341 = vrot.lane.b32.xlu0 %v1330, 126
        %v1342 = vpop.permute.xlu0 %1341
        %v1347 = vadd.f32 %v1302, %v1336
        %v1348 = vadd.f32 %v1303, %v1338
        %v1349 = vadd.f32 %v1304, %v1340
        %v1350 = vadd.f32 %v1305, %v1342
        %s1351 = scalar_lea.vmem %s3, 6
        %v1352 = vld [vmem:[%s1351] sm:$0x1]
        %v1353 = vld [vmem:[%s1351 + $0x1] sm:$0x1]
        %v1356 = vlaneseq
        %v1357 = vshrl.u32 %v1356, 7
        %v1358 = vsub.s32 0, %v1357
        %v1359 = vrot.slane %v1352, %v1358
        %v1360 = vlaneseq
        %v1361 = vshrl.u32 %v1360, 7
        %v1362 = vsub.s32 0, %v1361
        %v1363 = vrot.slane %v1353, %v1362
        %1364 = vset.pattern.permute.xlu0 0
        %1365 = vperm.xlu0 %1364, %v1359
        %v1366 = vpop.permute.xlu0 %1365
        %1368 = vset.pattern.permute.xlu0 0
        %1369 = vperm.xlu0 %1368, %v1363
        %v1370 = vpop.permute.xlu0 %1369
        %v1372 = vmul.f32 %v1366, %v1227
        %v1373 = vmul.f32 %v1366, %v1228
        %v1374 = vmul.f32 %v1366, %v1229
        %v1375 = vmul.f32 %v1370, %v1230
        %v1376 = vmul.f32 %v1370, %v1231
        %v1377 = vmul.f32 %v1370, %v1232
        %vm1384 = vcmask 1046528
        %v1385 = vrot.slane %v1372, 1
        %v1386 = vrot.slane %v1373, 1
        %v1387 = vsel %vm1384, %v1385, %v1386
        %v1388 = vrot.slane %v1374, 1
        %v1389 = vsel %vm1384, %v1386, %v1388
        %v1390 = vrot.slane %v1375, 1
        %v1391 = vrot.slane %v1376, 1
        %v1392 = vsel %vm1384, %v1390, %v1391
        %v1393 = vrot.slane %v1377, 1
        %v1394 = vsel %vm1384, %v1391, %v1393
        %v1399 = vadd.f32 %v1347, %v1387
        %v1400 = vadd.f32 %v1348, %v1389
        %v1401 = vadd.f32 %v1349, %v1392
        %v1402 = vadd.f32 %v1350, %v1394
        %s1403 = scalar_lea.vmem %s3, 8
        %v1404 = vld [vmem:[%s1403] sm:$0x1]
        %v1405 = vld [vmem:[%s1403 + $0x1] sm:$0x1]
        %v1408 = vlaneseq
        %v1409 = vshrl.u32 %v1408, 7
        %v1410 = vsub.s32 0, %v1409
        %v1411 = vrot.slane %v1404, %v1410
        %v1412 = vlaneseq
        %v1413 = vshrl.u32 %v1412, 7
        %v1414 = vsub.s32 0, %v1413
        %v1415 = vrot.slane %v1405, %v1414
        %1416 = vset.pattern.permute.xlu0 0
        %1417 = vperm.xlu0 %1416, %v1411
        %v1418 = vpop.permute.xlu0 %1417
        %1420 = vset.pattern.permute.xlu0 0
        %1421 = vperm.xlu0 %1420, %v1415
        %v1422 = vpop.permute.xlu0 %1421
        %v1424 = vmul.f32 %v1418, %v1227
        %v1425 = vmul.f32 %v1418, %v1228
        %v1426 = vmul.f32 %v1418, %v1229
        %v1427 = vmul.f32 %v1422, %v1230
        %v1428 = vmul.f32 %v1422, %v1231
        %v1429 = vmul.f32 %v1422, %v1232
        %v1436 = vrot.slane %v1424, 1
        %v1437 = vrot.slane %v1425, 1
        %v1438 = vsel %vm1384, %v1436, %v1437
        %v1439 = vrot.slane %v1426, 1
        %v1440 = vsel %vm1384, %v1437, %v1439
        %v1441 = vrot.slane %v1427, 1
        %v1442 = vrot.slane %v1428, 1
        %v1443 = vsel %vm1384, %v1441, %v1442
        %v1444 = vrot.slane %v1429, 1
        %v1445 = vsel %vm1384, %v1442, %v1444
        %1446 = vrot.lane.b32.xlu0 %v1438, 127
        %v1447 = vpop.permute.xlu0 %1446
        %1448 = vrot.lane.b32.xlu0 %v1440, 127
        %v1449 = vpop.permute.xlu0 %1448
        %1450 = vrot.lane.b32.xlu0 %v1443, 127
        %v1451 = vpop.permute.xlu0 %1450
        %1452 = vrot.lane.b32.xlu0 %v1445, 127
        %v1453 = vpop.permute.xlu0 %1452
        %v1458 = vadd.f32 %v1399, %v1447
        %v1459 = vadd.f32 %v1400, %v1449
        %v1460 = vadd.f32 %v1401, %v1451
        %v1461 = vadd.f32 %v1402, %v1453
        %s1462 = scalar_lea.vmem %s3, 10
        %v1463 = vld [vmem:[%s1462] sm:$0x1]
        %v1464 = vld [vmem:[%s1462 + $0x1] sm:$0x1]
        %v1467 = vlaneseq
        %v1468 = vshrl.u32 %v1467, 7
        %v1469 = vsub.s32 0, %v1468
        %v1470 = vrot.slane %v1463, %v1469
        %v1471 = vlaneseq
        %v1472 = vshrl.u32 %v1471, 7
        %v1473 = vsub.s32 0, %v1472
        %v1474 = vrot.slane %v1464, %v1473
        %1475 = vset.pattern.permute.xlu0 0
        %1476 = vperm.xlu0 %1475, %v1470
        %v1477 = vpop.permute.xlu0 %1476
        %1479 = vset.pattern.permute.xlu0 0
        %1480 = vperm.xlu0 %1479, %v1474
        %v1481 = vpop.permute.xlu0 %1480
        %v1483 = vmul.f32 %v1477, %v1227
        %v1484 = vmul.f32 %v1477, %v1228
        %v1485 = vmul.f32 %v1477, %v1229
        %v1486 = vmul.f32 %v1481, %v1230
        %v1487 = vmul.f32 %v1481, %v1231
        %v1488 = vmul.f32 %v1481, %v1232
        %v1495 = vrot.slane %v1483, 1
        %v1496 = vrot.slane %v1484, 1
        %v1497 = vsel %vm1384, %v1495, %v1496
        %v1498 = vrot.slane %v1485, 1
        %v1499 = vsel %vm1384, %v1496, %v1498
        %v1500 = vrot.slane %v1486, 1
        %v1501 = vrot.slane %v1487, 1
        %v1502 = vsel %vm1384, %v1500, %v1501
        %v1503 = vrot.slane %v1488, 1
        %v1504 = vsel %vm1384, %v1501, %v1503
        %1505 = vrot.lane.b32.xlu0 %v1497, 126
        %v1506 = vpop.permute.xlu0 %1505
        %1507 = vrot.lane.b32.xlu0 %v1499, 126
        %v1508 = vpop.permute.xlu0 %1507
        %1509 = vrot.lane.b32.xlu0 %v1502, 126
        %v1510 = vpop.permute.xlu0 %1509
        %1511 = vrot.lane.b32.xlu0 %v1504, 126
        %v1512 = vpop.permute.xlu0 %1511
        %v1517 = vadd.f32 %v1458, %v1506
        %v1518 = vadd.f32 %v1459, %v1508
        %v1519 = vadd.f32 %v1460, %v1510
        %v1520 = vadd.f32 %v1461, %v1512
        %s1521 = scalar_lea.vmem %s3, 12
        %v1522 = vld [vmem:[%s1521] sm:$0x1]
        %v1523 = vld [vmem:[%s1521 + $0x1] sm:$0x1]
        %v1526 = vlaneseq
        %v1527 = vshrl.u32 %v1526, 7
        %v1528 = vsub.s32 0, %v1527
        %v1529 = vrot.slane %v1522, %v1528
        %v1530 = vlaneseq
        %v1531 = vshrl.u32 %v1530, 7
        %v1532 = vsub.s32 0, %v1531
        %v1533 = vrot.slane %v1523, %v1532
        %1534 = vset.pattern.permute.xlu0 0
        %1535 = vperm.xlu0 %1534, %v1529
        %v1536 = vpop.permute.xlu0 %1535
        %1538 = vset.pattern.permute.xlu0 0
        %1539 = vperm.xlu0 %1538, %v1533
        %v1540 = vpop.permute.xlu0 %1539
        %v1542 = vmul.f32 %v1536, %v1227
        %v1543 = vmul.f32 %v1536, %v1228
        %v1544 = vmul.f32 %v1536, %v1229
        %v1545 = vmul.f32 %v1540, %v1230
        %v1546 = vmul.f32 %v1540, %v1231
        %v1547 = vmul.f32 %v1540, %v1232
        %vm1554 = vcmask 1045504
        %v1555 = vrot.slane %v1542, 2
        %v1556 = vrot.slane %v1543, 2
        %v1557 = vsel %vm1554, %v1555, %v1556
        %v1558 = vrot.slane %v1544, 2
        %v1559 = vsel %vm1554, %v1556, %v1558
        %v1560 = vrot.slane %v1545, 2
        %v1561 = vrot.slane %v1546, 2
        %v1562 = vsel %vm1554, %v1560, %v1561
        %v1563 = vrot.slane %v1547, 2
        %v1564 = vsel %vm1554, %v1561, %v1563
        %v1569 = vadd.f32 %v1517, %v1557
        %v1570 = vadd.f32 %v1518, %v1559
        %v1571 = vadd.f32 %v1519, %v1562
        %v1572 = vadd.f32 %v1520, %v1564
        %s1573 = scalar_lea.vmem %s3, 14
        %v1574 = vld [vmem:[%s1573] sm:$0x1]
        %v1575 = vld [vmem:[%s1573 + $0x1] sm:$0x1]
        %v1578 = vlaneseq
        %v1579 = vshrl.u32 %v1578, 7
        %v1580 = vsub.s32 0, %v1579
        %v1581 = vrot.slane %v1574, %v1580
        %v1582 = vlaneseq
        %v1583 = vshrl.u32 %v1582, 7
        %v1584 = vsub.s32 0, %v1583
        %v1585 = vrot.slane %v1575, %v1584
        %1586 = vset.pattern.permute.xlu0 0
        %1587 = vperm.xlu0 %1586, %v1581
        %v1588 = vpop.permute.xlu0 %1587
        %1590 = vset.pattern.permute.xlu0 0
        %1591 = vperm.xlu0 %1590, %v1585
        %v1592 = vpop.permute.xlu0 %1591
        %v1594 = vmul.f32 %v1588, %v1227
        %v1595 = vmul.f32 %v1588, %v1228
        %v1596 = vmul.f32 %v1588, %v1229
        %v1597 = vmul.f32 %v1592, %v1230
        %v1598 = vmul.f32 %v1592, %v1231
        %v1599 = vmul.f32 %v1592, %v1232
        %v1606 = vrot.slane %v1594, 2
        %v1607 = vrot.slane %v1595, 2
        %v1608 = vsel %vm1554, %v1606, %v1607
        %v1609 = vrot.slane %v1596, 2
        %v1610 = vsel %vm1554, %v1607, %v1609
        %v1611 = vrot.slane %v1597, 2
        %v1612 = vrot.slane %v1598, 2
        %v1613 = vsel %vm1554, %v1611, %v1612
        %v1614 = vrot.slane %v1599, 2
        %v1615 = vsel %vm1554, %v1612, %v1614
        %1616 = vrot.lane.b32.xlu0 %v1608, 127
        %v1617 = vpop.permute.xlu0 %1616
        %1618 = vrot.lane.b32.xlu0 %v1610, 127
        %v1619 = vpop.permute.xlu0 %1618
        %1620 = vrot.lane.b32.xlu0 %v1613, 127
        %v1621 = vpop.permute.xlu0 %1620
        %1622 = vrot.lane.b32.xlu0 %v1615, 127
        %v1623 = vpop.permute.xlu0 %1622
        %v1628 = vadd.f32 %v1569, %v1617
        %v1629 = vadd.f32 %v1570, %v1619
        %v1630 = vadd.f32 %v1571, %v1621
        %v1631 = vadd.f32 %v1572, %v1623
        %s1632 = scalar_lea.vmem %s3, 16
        %v1633 = vld [vmem:[%s1632] sm:$0x1]
        %v1634 = vld [vmem:[%s1632 + $0x1] sm:$0x1]
        %v1637 = vlaneseq
        %v1638 = vshrl.u32 %v1637, 7
        %v1639 = vsub.s32 0, %v1638
        %v1640 = vrot.slane %v1633, %v1639
        %v1641 = vlaneseq
        %v1642 = vshrl.u32 %v1641, 7
        %v1643 = vsub.s32 0, %v1642
        %v1644 = vrot.slane %v1634, %v1643
        %1645 = vset.pattern.permute.xlu0 0
        %1646 = vperm.xlu0 %1645, %v1640
        %v1647 = vpop.permute.xlu0 %1646
        %1649 = vset.pattern.permute.xlu0 0
        %1650 = vperm.xlu0 %1649, %v1644
        %v1651 = vpop.permute.xlu0 %1650
        %v1653 = vmul.f32 %v1647, %v1227
        %v1654 = vmul.f32 %v1647, %v1228
        %v1655 = vmul.f32 %v1647, %v1229
        %v1656 = vmul.f32 %v1651, %v1230
        %v1657 = vmul.f32 %v1651, %v1231
        %v1658 = vmul.f32 %v1651, %v1232
        %v1665 = vrot.slane %v1653, 2
        %v1666 = vrot.slane %v1654, 2
        %v1667 = vsel %vm1554, %v1665, %v1666
        %v1668 = vrot.slane %v1655, 2
        %v1669 = vsel %vm1554, %v1666, %v1668
        %v1670 = vrot.slane %v1656, 2
        %v1671 = vrot.slane %v1657, 2
        %v1672 = vsel %vm1554, %v1670, %v1671
        %v1673 = vrot.slane %v1658, 2
        %v1674 = vsel %vm1554, %v1671, %v1673
        %1675 = vrot.lane.b32.xlu0 %v1667, 126
        %v1676 = vpop.permute.xlu0 %1675
        %1677 = vrot.lane.b32.xlu0 %v1669, 126
        %v1678 = vpop.permute.xlu0 %1677
        %1679 = vrot.lane.b32.xlu0 %v1672, 126
        %v1680 = vpop.permute.xlu0 %1679
        %1681 = vrot.lane.b32.xlu0 %v1674, 126
        %v1682 = vpop.permute.xlu0 %1681
        %v1687 = vadd.f32 %v1628, %v1676
        %v1688 = vadd.f32 %v1629, %v1678
        %v1689 = vadd.f32 %v1630, %v1680
        %v1690 = vadd.f32 %v1631, %v1682
        %v1691 = vsel %vm464, %v1687, 0.0
        %v1692 = vsel %vm464, %v1160, 0.0
        %v1693 = vadd.f32 %v1691, %v1692
        %v1694 = vsel %vm464, %v1689, 0.0
        %v1695 = vadd.f32 %v1693, %v1694
        %v1696 = vsel %vm464, %v1170, 0.0
        %v1697 = vadd.f32 %v1695, %v1696
        %v1698 = vsel %vm464, %v1688, 0.0
        %v1699 = vsel %vm464, %v1165, 0.0
        %v1700 = vadd.f32 %v1698, %v1699
        %v1701 = vsel %vm464, %v1690, 0.0
        %v1702 = vadd.f32 %v1700, %v1701
        %v1703 = vsel %vm464, %v1175, 0.0
        %v1704 = vadd.f32 %v1702, %v1703
        %v1705 = vmul.f32 %v1697, %v479
        %v1706 = vmul.f32 %v1704, %v479
        %v1707 = vsub.f32 %v1687, %v1705
        %v1708 = vsub.f32 %v1688, %v1706
        %v1709 = vsub.f32 %v1160, %v1705
        %v1710 = vsub.f32 %v1165, %v1706
        %v1711 = vsub.f32 %v1689, %v1705
        %v1712 = vsub.f32 %v1690, %v1706
        %v1713 = vsub.f32 %v1170, %v1705
        %v1714 = vsub.f32 %v1175, %v1706
        %v1715 = vmul.f32 %v1707, %v1707
        %v1716 = vmul.f32 %v1708, %v1708
        %v1717 = vmul.f32 %v1709, %v1709
        %v1718 = vmul.f32 %v1710, %v1710
        %v1719 = vmul.f32 %v1711, %v1711
        %v1720 = vmul.f32 %v1712, %v1712
        %v1721 = vmul.f32 %v1713, %v1713
        %v1722 = vmul.f32 %v1714, %v1714
        %v1723 = vsel %vm464, %v1715, 0.0
        %v1724 = vsel %vm464, %v1717, 0.0
        %v1725 = vadd.f32 %v1723, %v1724
        %v1726 = vsel %vm464, %v1719, 0.0
        %v1727 = vadd.f32 %v1725, %v1726
        %v1728 = vsel %vm464, %v1721, 0.0
        %v1729 = vadd.f32 %v1727, %v1728
        %v1730 = vsel %vm464, %v1716, 0.0
        %v1731 = vsel %vm464, %v1718, 0.0
        %v1732 = vadd.f32 %v1730, %v1731
        %v1733 = vsel %vm464, %v1720, 0.0
        %v1734 = vadd.f32 %v1732, %v1733
        %v1735 = vsel %vm464, %v1722, 0.0
        %v1736 = vadd.f32 %v1734, %v1735
        %v1737 = vmul.f32 %v1729, %v479
        %v1738 = vmul.f32 %v1736, %v479
        %v1739 = vadd.f32 %v1737, 1e-06
        %v1740 = vadd.f32 %v1738, 1e-06
        %v1741 = vrsqrt.pop %v1739
        %v1742 = vrsqrt.pop %v1740
        %v1743 = vmul.f32 %v1707, %v1741
        %v1744 = vmul.f32 %v1708, %v1742
        %v1745 = vmul.f32 %v1709, %v1741
        %v1746 = vmul.f32 %v1710, %v1742
        %v1747 = vmul.f32 %v1711, %v1741
        %v1748 = vmul.f32 %v1712, %v1742
        %v1749 = vmul.f32 %v1713, %v1741
        %v1750 = vmul.f32 %v1714, %v1742
        %v1751 = vld [vmem:[%s10] sm:$0x1]
        %v1752 = vld [vmem:[%s10 + $0x1] sm:$0x1]
        %v1753 = vld [vmem:[%s10 + $0x2] sm:$0x1]
        %v1754 = vld [vmem:[%s10 + $0x3] sm:$0x1]
        %v1759 = vlaneseq
        %v1760 = vshrl.u32 %v1759, 7
        %v1761 = vsub.s32 0, %v1760
        %v1762 = vrot.slane %v1751, %v1761
        %v1763 = vlaneseq
        %v1764 = vshrl.u32 %v1763, 7
        %v1765 = vsub.s32 0, %v1764
        %v1766 = vrot.slane %v1752, %v1765
        %v1767 = vlaneseq
        %v1768 = vshrl.u32 %v1767, 7
        %v1769 = vsub.s32 0, %v1768
        %v1770 = vrot.slane %v1753, %v1769
        %v1771 = vlaneseq
        %v1772 = vshrl.u32 %v1771, 7
        %v1773 = vsub.s32 0, %v1772
        %v1774 = vrot.slane %v1754, %v1773
        %1775 = vset.pattern.permute.xlu0 0
        %1776 = vperm.xlu0 %1775, %v1762
        %v1777 = vpop.permute.xlu0 %1776
        %1779 = vset.pattern.permute.xlu0 0
        %1780 = vperm.xlu0 %1779, %v1766
        %v1781 = vpop.permute.xlu0 %1780
        %1783 = vset.pattern.permute.xlu0 0
        %1784 = vperm.xlu0 %1783, %v1770
        %v1785 = vpop.permute.xlu0 %1784
        %1787 = vset.pattern.permute.xlu0 0
        %1788 = vperm.xlu0 %1787, %v1774
        %v1789 = vpop.permute.xlu0 %1788
        %v1791 = vmul.f32 %v1777, %v1743
        %v1792 = vmul.f32 %v1777, %v1744
        %v1793 = vmul.f32 %v1781, %v1745
        %v1794 = vmul.f32 %v1781, %v1746
        %v1795 = vmul.f32 %v1785, %v1747
        %v1796 = vmul.f32 %v1785, %v1748
        %v1797 = vmul.f32 %v1789, %v1749
        %v1798 = vmul.f32 %v1789, %v1750
        %v1799 = vld [vmem:[%s11] sm:$0x1]
        %v1800 = vld [vmem:[%s11 + $0x1] sm:$0x1]
        %v1801 = vld [vmem:[%s11 + $0x2] sm:$0x1]
        %v1802 = vld [vmem:[%s11 + $0x3] sm:$0x1]
        %v1807 = vlaneseq
        %v1808 = vshrl.u32 %v1807, 7
        %v1809 = vsub.s32 0, %v1808
        %v1810 = vrot.slane %v1799, %v1809
        %v1811 = vlaneseq
        %v1812 = vshrl.u32 %v1811, 7
        %v1813 = vsub.s32 0, %v1812
        %v1814 = vrot.slane %v1800, %v1813
        %v1815 = vlaneseq
        %v1816 = vshrl.u32 %v1815, 7
        %v1817 = vsub.s32 0, %v1816
        %v1818 = vrot.slane %v1801, %v1817
        %v1819 = vlaneseq
        %v1820 = vshrl.u32 %v1819, 7
        %v1821 = vsub.s32 0, %v1820
        %v1822 = vrot.slane %v1802, %v1821
        %1823 = vset.pattern.permute.xlu0 0
        %1824 = vperm.xlu0 %1823, %v1810
        %v1825 = vpop.permute.xlu0 %1824
        %1827 = vset.pattern.permute.xlu0 0
        %1828 = vperm.xlu0 %1827, %v1814
        %v1829 = vpop.permute.xlu0 %1828
        %1831 = vset.pattern.permute.xlu0 0
        %1832 = vperm.xlu0 %1831, %v1818
        %v1833 = vpop.permute.xlu0 %1832
        %1835 = vset.pattern.permute.xlu0 0
        %1836 = vperm.xlu0 %1835, %v1822
        %v1837 = vpop.permute.xlu0 %1836
        %v1839 = vadd.f32 %v1791, %v1825
        %v1840 = vadd.f32 %v1792, %v1825
        %v1841 = vadd.f32 %v1793, %v1829
        %v1842 = vadd.f32 %v1794, %v1829
        %v1843 = vadd.f32 %v1795, %v1833
        %v1844 = vadd.f32 %v1796, %v1833
        %v1845 = vadd.f32 %v1797, %v1837
        %v1846 = vadd.f32 %v1798, %v1837
        %1847 = vst.msk [vmem:[%s450] sm:$0xff] %vm464, %v1839
        %1848 = vst.msk [vmem:[%s450 + $0x8] sm:$0xff] %vm464, %v1840
        %1849 = vst.msk [vmem:[%s450 + $0x10] sm:$0xff] %vm464, %v1841
        %1850 = vst.msk [vmem:[%s450 + $0x18] sm:$0xff] %vm464, %v1842
        %1851 = vst.msk [vmem:[%s450 + $0x20] sm:$0xff] %vm464, %v1843
        %1852 = vst.msk [vmem:[%s450 + $0x28] sm:$0xff] %vm464, %v1844
        %1853 = vst.msk [vmem:[%s450 + $0x30] sm:$0xff] %vm464, %v1845
        %1854 = vst.msk [vmem:[%s450 + $0x38] sm:$0xff] %vm464, %v1846
        %s1855 = sand.u32 %s293, 1
        %s1856 = scalar_lea.sflag [#allocation4], %s1855
        %s1857 = sand.u32 %s293, 1
        %s1858 = smul.addr %s1857, 64
        %s1859 = scalar_lea.vmem [#allocation8], %s1858
        // Predicated region
        $region81: #{tpu_custom_call.1} parent=67 // pred_check
          %p1860 = pneg %p303
        $region82: #{tpu_custom_call.1} parent=67 // pred_check_branch
          %1862 = sbr.rel (%p1860) target = $region84
        $region83: #{tpu_custom_call.1} parent=67 // pred_region
          %s1864 = ssub.s32 1024, 1024
          %1865 = vsyncadd %s1856, %s1864
          %s1866 = smul.addr %s28, 8
          %s1867 = smul.addr %s1866, 128
          %s1868 = scalar_lea.hbm %s12, %s1867
          %s1869 = sshll.u32 %s1859, 4
          %s1870 = int_to_ptr.vmem [resolvable:$true] %s1869
          %1875 = dma.vmem_to_hbm [thread:$0]  %s1870, 1024, %s1868, %s1856, 128, 128, 8
        $region84: #{tpu_custom_call.1} parent=67 // pred_fallthru
          _
      $region68: #{tpu_custom_call.1} parent=5 // pred_fallthru
        _
      %p1876 = scmp.le.s32.totalorder 2, %s23
      // Predicated region
      $region85: #{tpu_custom_call.1} parent=5 // pred_check
        %p1877 = pneg %p1876
      $region86: #{tpu_custom_call.1} parent=5 // pred_check_branch
        %1879 = sbr.rel (%p1877) target = $region88
      $region87: #{tpu_custom_call.1} parent=5 // pred_region
        %s1880 = ssub.s32 %s23, 2
        // Predicated region
        $region89: #{tpu_custom_call.1} parent=87 // pred_check
          %p1881 = pneg %p309
        $region90: #{tpu_custom_call.1} parent=87 // pred_check_branch
          %1883 = sbr.rel (%p1881) target = $region92
        $region91: #{tpu_custom_call.1} parent=87 // pred_region
          %s1884 = sand.u32 %s294, 1
          %s1885 = scalar_lea.sflag [#allocation4], %s1884
          %s1886 = sand.u32 %s294, 1
          %s1887 = smul.addr %s1886, 64
          %s1888 = scalar_lea.vmem [#allocation8], %s1887
          %1889 = dma.done %s1885, 1024
        $region92: #{tpu_custom_call.1} parent=87 // pred_fallthru
          _
      $region88: #{tpu_custom_call.1} parent=5 // pred_fallthru
        _
    $region6: #{tpu_custom_call.1} parent=1 // loop_footer
      %s27 = sadd.s32 1, %s23
    $region7: #{tpu_custom_call.1} parent=1 // loop_footer_branch
      %22 = sbr.rel target = $region3
    $region8: #{tpu_custom_call.1} parent=1 // loop_exit
      _
    %1890 = vsyncpa [#allocation3], 1
    %s1891 = scalar_lea.sflag [#allocation3], 1
    %1892 = vsyncpa %s1891, 1
    %1893 = vsyncpa [#allocation6], 1
    %1894 = vsyncpa [#allocation4], 1
    %s1895 = scalar_lea.sflag [#allocation4], 1
    %1896 = vsyncpa %s1895, 1

</llo_original>
